<compile_context>
chip_gen: v7x
topology: tpu7x:2x2x1
jax: 0.10.0
libtpu: 0.0.40
codegen_flags: <defaults>
</compile_context>

<pallas_src>
import jax
import jax.numpy as jnp
import numpy as np
from jax.experimental import pallas as pl
from jax.experimental.pallas import tpu as pltpu


# --------------------------------------------------------------------------- #
# Block-size selection
# --------------------------------------------------------------------------- #

def _round_up(x, m):
    return ((x + m - 1) // m) * m


def _pick_tile(total, target, quantum=8):
    """Largest divisor of `total` that is <= target and TPU-block-legal
    (a multiple of `quantum`, or the full extent)."""
    cands = [d for d in range(1, total + 1)
             if total % d == 0 and (d % quantum == 0 or d == total)]
    under = [d for d in cands if d <= target]
    return max(under) if under else min(cands)


def _hw_params():
    """(vmem_limit_bytes, target_step_bytes, num_tensorcores), generation-aware."""
    try:
        cap = int(pltpu.get_tpu_info().vmem_capacity_bytes)
    except Exception:
        cap = 64 * 1024 * 1024                      # conservative: v7x 64 MiB/TC
    vmem_limit = min((cap * 3) // 4, 96 * 1024 * 1024)
    # v7x: small VMEM but ~2.3x v6e HBM BW -> bigger steps to amortize the fixed
    # ~0.35 us per-grid-step cost. v5e/v6e: ~4 MiB/step already sits on the
    # 85% HBM-roofline plateau.
    target_step_bytes = (8 if cap <= 64 * 1024 * 1024 else 4) * 1024 * 1024
    try:
        num_cores = max(1, int(getattr(jax.devices()[0], "num_cores", 1)))
    except Exception:
        num_cores = 1
    return vmem_limit, target_step_bytes, num_cores


def _choose_blocks(n_slabs, npts, c_in_eff, dtype_bytes, vmem_limit,
                   target_step_bytes, num_cores, group_size=None, tile_np=None):
    """Pick (G, TP): G (batch*anchor) slabs and TP points per grid step.

    Sized so each step streams ~target_step_bytes of real feature bytes while the
    double-buffered padded input block stays within ~half of vmem_limit.
    """
    # sublane quantum for the second-to-last block dim
    sub = 8 if dtype_bytes >= 4 else (16 if dtype_bytes == 2 else 32)
    if tile_np is None:
        tile_np = _pick_tile(npts, 2048, quantum=sub)
    if group_size is None:
        lane_pad = _round_up(c_in_eff, 128)
        tp_pad = _round_up(tile_np, sub)
        # double-buffered input block must fit in roughly half the VMEM limit
        # (rest is headroom for the f32 intermediate, weights, output, compiler scratch)
        budget_g = max(1, (vmem_limit // 2) // (2 * tp_pad * lane_pad * dtype_bytes))
        # real HBM bytes streamed per step
        target_g = max(1, target_step_bytes // max(1, tile_np * c_in_eff * dtype_bytes))
        g = max(1, min(budget_g, target_g))
        group_size = _pick_tile(n_slabs, g, quantum=8)  # output block sublane dim
        # Only v7x (2 TensorCores/chip) benefits from splitting the "parallel" axis.
        if num_cores >= 2 and group_size == n_slabs and n_slabs > 1:
            smaller = _pick_tile(n_slabs, max(1, n_slabs // 2), quantum=8)
            if smaller < n_slabs:
                group_size = smaller
    # TODO(synk): no padding/masking path — npts and nb*na need block-legal divisors.
    assert n_slabs % group_size == 0, (n_slabs, group_size)
    assert npts % tile_np == 0, (npts, tile_np)
    return group_size, tile_np


# --------------------------------------------------------------------------- #
# Kernels
# --------------------------------------------------------------------------- #

def _so3_pointnet_kernel_fused(x_ref, w_ref, o_ref):
    # x_ref : (G, TP, nc+3)  channels-last slab of [feats | rotated xyz]
    # w_ref : (nc+3, c_out)  full 1x1-conv weight (bias added after the max)
    # o_ref : (G, c_out)     running max over point tiles (block index invariant in k,
    #                        so it stays VMEM-resident across the inner grid axis)
    k = pl.program_id(1)
    g, tp, c_in = x_ref.shape
    c_out = o_ref.shape[-1]

    # One big MXU matmul over all G*TP points of this step; f32 accumulation.
    x = x_ref[...].reshape(g * tp, c_in)
    h = jnp.dot(x, w_ref[...], preferred_element_type=jnp.float32)
    m = jnp.max(h.reshape(g, tp, c_out), axis=1)              # (G, c_out), f32

    @pl.when(k == 0)
    def _first():
        o_ref[...] = m

    @pl.when(k > 0)
    def _rest():
        o_ref[...] = jnp.maximum(o_ref[...], m)


def _so3_pointnet_kernel_split(xf_ref, xz_ref, wf_ref, wz_ref, o_ref):
    # Split-weight variant (used when folding xyz into feats would grow the
    # 128-lane padding of the feature block, i.e. nc % 128 in {0, 126, 127}).
    k = pl.program_id(1)
    g, tp, nc = xf_ref.shape
    c_out = o_ref.shape[-1]

    xf = xf_ref[...].reshape(g * tp, nc)
    xz = xz_ref[...].reshape(g * tp, xz_ref.shape[-1])
    h = jnp.dot(xf, wf_ref[...], preferred_element_type=jnp.float32)
    h = h + jnp.dot(xz, wz_ref[...], preferred_element_type=jnp.float32)
    m = jnp.max(h.reshape(g, tp, c_out), axis=1)               # (G, c_out), f32

    @pl.when(k == 0)
    def _first():
        o_ref[...] = m

    @pl.when(k > 0)
    def _rest():
        o_ref[...] = jnp.maximum(o_ref[...], m)


# --------------------------------------------------------------------------- #
# Wrapper
# --------------------------------------------------------------------------- #

def pointnet_so3_conv(xyz, feats, anchors, weight, bias, *,
                      compute_dtype=jnp.bfloat16,
                      group_size=None, tile_np=None, force_split=None):
    """Forward pass of PointnetSO3Conv.

    xyz:     (nb, 3, np) float32
    feats:   (nb, nc, np, na) float32
    anchors: (na, 3, 3) float32
    weight:  (c_out, nc+3, 1, 1) float32   (Conv2d 1x1 weight, concat order [feats, xyz])
    bias:    (c_out,) float32
    compute_dtype: dtype of the streamed inputs / weights (bf16 halves HBM traffic;
                   accumulation and the max stay in float32 inside the kernel).
    returns: (nb, c_out, na) float32
    """
    nb, nc, npts, na = feats.shape
    c_out = weight.shape[0]
    n_slabs = nb * na

    vmem_limit, target_step_bytes, num_cores = _hw_params()

    # ---- tiny wrapper-side prep (cheap tensors; the only big pass is the feats
    #      channels-last relayout, done at compute_dtype width) ----
    xyz_c = xyz - jnp.mean(xyz, axis=2, keepdims=True)              # (nb, 3, np)
    if na == 1:
        x_xyz = jnp.transpose(xyz_c, (0, 2, 1)).reshape(n_slabs, npts, 3)
    else:
        # directly in (batch, anchor, point, coord) slab layout
        x_xyz = jnp.einsum('aji,bjn->bani', anchors, xyz_c).reshape(n_slabs, npts, 3)
    x_xyz = x_xyz.astype(compute_dtype)

    # single layout pass of the dominant tensor, already at compute_dtype width:
    # NCHW -> (slab, point, channel)
    feats_cl = jnp.transpose(feats.astype(compute_dtype),
                             (0, 3, 2, 1)).reshape(n_slabs, npts, nc)

    w2 = weight[:, :, 0, 0].astype(jnp.float32)                     # (c_out, nc+3)

    # Fold the 3 xyz channels into the feature block unless that would push the
    # lane padding of the (TP, nc) block to the next multiple of 128.
    if force_split is None:
        fold = _round_up(nc + 3, 128) == _round_up(nc, 128)
    else:
        fold = not force_split

    dtype_bytes = jnp.dtype(compute_dtype).itemsize
    c_in_eff = (nc + 3) if fold else nc
    G, TP = _choose_blocks(n_slabs, npts, c_in_eff, dtype_bytes, vmem_limit,
                           target_step_bytes, num_cores, group_size, tile_np)
    grid = (n_slabs // G, npts // TP)

    cost = pl.CostEstimate(
        flops=2 * n_slabs * npts * (nc + 3) * c_out,
        transcendentals=0,
        bytes_accessed=n_slabs * npts * (nc + 3) * dtype_bytes + n_slabs * c_out * 4,
    )
    cparams = pltpu.CompilerParams(
        dimension_semantics=("parallel", "arbitrary"),
        vmem_limit_bytes=vmem_limit,
    )

    if fold:
        # xyz folded into the same channels-last write; one weight, one dot.
        x_all = jnp.concatenate([feats_cl, x_xyz], axis=-1)        # (n_slabs, np, nc+3)
        w_all = w2.T.astype(compute_dtype)                          # (nc+3, c_out)
        out = pl.pallas_call(
            _so3_pointnet_kernel_fused,
            out_shape=jax.ShapeDtypeStruct((n_slabs, c_out), jnp.float32),
            grid=grid,
            in_specs=[
                pl.BlockSpec((G, TP, nc + 3), lambda i, k: (i, k, 0)),
                pl.BlockSpec((nc + 3, c_out), lambda i, k: (0, 0)),
            ],
            out_specs=pl.BlockSpec((G, c_out), lambda i, k: (i, 0)),
            compiler_params=cparams,
            cost_estimate=cost,
        )(x_all, w_all)
    else:
        # split the 1x1-conv weight so the concat becomes two accumulated matmuls
        w_feat = w2[:, :nc].T.astype(compute_dtype)                 # (nc, c_out)
        w_xyz = w2[:, nc:].T.astype(compute_dtype)                  # (3,  c_out)
        out = pl.pallas_call(
            _so3_pointnet_kernel_split,
            out_shape=jax.ShapeDtypeStruct((n_slabs, c_out), jnp.float32),
            grid=grid,
            in_specs=[
                pl.BlockSpec((G, TP, nc), lambda i, k: (i, k, 0)),
                pl.BlockSpec((G, TP, 3), lambda i, k: (i, k, 0)),
                pl.BlockSpec((nc, c_out), lambda i, k: (0, 0)),
                pl.BlockSpec((3, c_out), lambda i, k: (0, 0)),
            ],
            out_specs=pl.BlockSpec((G, c_out), lambda i, k: (i, 0)),
            compiler_params=cparams,
            cost_estimate=cost,
        )(feats_cl, x_xyz, w_feat, w_xyz)

    # bias after the max (identical result: bias is constant per output channel)
    out = out + bias.astype(jnp.float32)[None, :]                   # (nb*na, c_out)
    out = out.reshape(nb, na, c_out)
    return jnp.transpose(out, (0, 2, 1))                            # (nb, c_out, na)


# --------------------------------------------------------------------------- #
# Pure-JAX reference (mirrors the PyTorch module)
# --------------------------------------------------------------------------- #

def reference(xyz, feats, anchors, weight, bias):
    nb, nc, npts, na = feats.shape
    xyz_c = xyz - jnp.mean(xyz, axis=2, keepdims=True)
    if na == 1:
        xyzr = xyz_c[..., None]
    else:
        xyzr = jnp.einsum('aji,bjn->bina', anchors, xyz_c)
    feats_cat = jnp.concatenate([feats, xyzr], axis=1)              # (nb, nc+3, np, na)
    w2 = weight[:, :, 0, 0]                                         # (c_out, nc+3)
    h = jnp.einsum('oc,bcpa->bopa', w2, feats_cat) + bias[None, :, None, None]
    return jnp.max(h, axis=2)                                       # (nb, c_out, na)


if __name__ == "__main__":
    # Small, deterministic synthetic setup.
    nb, nc, npts, na = 2, 8, 64, 8          # kanchor = 8
    dim_in, dim_out = nc, 16
    c_in = dim_in + 3

    key = jax.random.PRNGKey(0)
    k_xyz, k_feat, k_anc, k_w, k_b = jax.random.split(key, 5)

    xyz = jax.random.normal(k_xyz, (nb, 3, npts), dtype=jnp.float32)
    feats = jax.random.normal(k_feat, (nb, nc, npts, na), dtype=jnp.float32)

    # Deterministic synthetic "anchors" (stand-in for L.get_anchors(kanchor)):
    # orthonormalize random 3x3 matrices so they are proper rotations.
    raw = jax.random.normal(k_anc, (na, 3, 3), dtype=jnp.float32)
    q, _ = jnp.linalg.qr(raw)
    anchors = q.astype(jnp.float32)                                 # (na, 3, 3)

    # Conv2d(dim_in+3, dim_out, 1) parameters, deterministic init.
    weight = (jax.random.normal(k_w, (dim_out, c_in, 1, 1), dtype=jnp.float32)
              * (1.0 / np.sqrt(c_in)))
    bias = jax.random.normal(k_b, (dim_out,), dtype=jnp.float32) * 0.1

    ref = jax.block_until_ready(reference(xyz, feats, anchors, weight, bias))

    # 1) Default fast path: bf16 inputs/weights (f32 accumulation), xyz folded
    #    into the feature block, byte-targeted auto block sizing.
    out_bf16 = jax.block_until_ready(
        pointnet_so3_conv(xyz, feats, anchors, weight, bias))
    assert out_bf16.shape == (nb, dim_out, na), out_bf16.shape
    np.testing.assert_allclose(np.asarray(out_bf16), np.asarray(ref),
                               rtol=5e-2, atol=5e-2)

    # 2) Exact f32 path, forcing a multi-step grid on both axes
    #    (2 slab steps x 4 point tiles) to exercise the resident-output running max.
    out_f32 = jax.block_until_ready(
        pointnet_so3_conv(xyz, feats, anchors, weight, bias,
                          compute_dtype=jnp.float32, group_size=8, tile_np=16))
    np.testing.assert_allclose(np.asarray(out_f32), np.asarray(ref),
                               rtol=1e-4, atol=1e-4)

    # 3) Split-weight path (auto-selected when nc % 128 in {0, 126, 127}),
    #    exercised explicitly at these shapes.
    out_split = jax.block_until_ready(
        pointnet_so3_conv(xyz, feats, anchors, weight, bias,
                          compute_dtype=jnp.float32, group_size=8, tile_np=16,
                          force_split=True))
    np.testing.assert_allclose(np.asarray(out_split), np.asarray(ref),
                               rtol=1e-4, atol=1e-4)

    print("KERNEL_OK")
</pallas_src>

<mosaic_0001>
module attributes {stable_mosaic.version = 11 : i64} {
  func.func @_so3_pointnet_kernel_fused(%arg0: i32, %arg1: i32, %arg2: memref<16x64x11xbf16, #tpu.memory_space<vmem>>, %arg3: memref<11x16xbf16, #tpu.memory_space<vmem>>, %arg4: memref<16x16xf32, #tpu.memory_space<vmem>>) attributes {dimension_semantics = [#tpu.dimension_semantics<parallel>, #tpu.dimension_semantics<arbitrary>], iteration_bounds = array<i64: 1, 1>, scalar_prefetch = 0 : i64, scratch_operands = 0 : i64, tpu.core_type = #tpu.core_type<tc>, window_params = [{transform_indices = @transform_0, window_bounds = array<i64: 16, 64, 11>}, {pipeline_mode = #tpu.pipeline_mode<synchronous>, transform_indices = @transform_1, window_bounds = array<i64: 11, 16>}, {transform_indices = @transform_2, window_bounds = array<i64: 16, 16>}]} {
    %c0 = arith.constant 0 : index
    %c0_0 = arith.constant 0 : index
    %c0_1 = arith.constant 0 : index
    %0 = vector.load %arg2[%c0, %c0_0, %c0_1] : memref<16x64x11xbf16, #tpu.memory_space<vmem>>, vector<16x64x11xbf16>
    %1 = vector.shape_cast %0 : vector<16x64x11xbf16> to vector<1024x11xbf16>
    %c0_2 = arith.constant 0 : index
    %c0_3 = arith.constant 0 : index
    %2 = vector.load %arg3[%c0_2, %c0_3] : memref<11x16xbf16, #tpu.memory_space<vmem>>, vector<11x16xbf16>
    %cst = arith.constant dense<0.000000e+00> : vector<1024x16xf32>
    %3 = tpu.matmul %1, %2, %cst {dimension_numbers = #tpu.dot_dimension_numbers<[1], [0], [0], [1], [0, 0, 1, 1], [], []>} : vector<1024x11xbf16>, vector<11x16xbf16>, vector<1024x16xf32> -> vector<1024x16xf32>
    %4 = vector.shape_cast %3 : vector<1024x16xf32> to vector<16x64x16xf32>
    %cst_4 = arith.constant dense<0xFF800000> : vector<16x16xf32>
    %5 = vector.multi_reduction <maximumf>, %4, %cst_4 [1] : vector<16x64x16xf32> to vector<16x16xf32>
    %c0_i32 = arith.constant 0 : i32
    %6 = arith.cmpi eq, %arg1, %c0_i32 : i32
    %7 = arith.extui %6 : i1 to i32
    %c0_i32_5 = arith.constant 0 : i32
    %8 = arith.cmpi ne, %7, %c0_i32_5 : i32
    scf.if %8 {
      %c0_8 = arith.constant 0 : index
      %c0_9 = arith.constant 0 : index
      %12 = vector.load %arg4[%c0_8, %c0_9] : memref<16x16xf32, #tpu.memory_space<vmem>>, vector<16x16xf32>
      tpu.vector_store %arg4[%c0_8, %c0_9], %5 {strides = array<i32>} : memref<16x16xf32, #tpu.memory_space<vmem>>, vector<16x16xf32>,
    } else {
    }
    %c0_i32_6 = arith.constant 0 : i32
    %9 = arith.cmpi sgt, %arg1, %c0_i32_6 : i32
    %10 = arith.extui %9 : i1 to i32
    %c0_i32_7 = arith.constant 0 : i32
    %11 = arith.cmpi ne, %10, %c0_i32_7 : i32
    scf.if %11 {
      %c0_8 = arith.constant 0 : index
      %c0_9 = arith.constant 0 : index
      %12 = vector.load %arg4[%c0_8, %c0_9] : memref<16x16xf32, #tpu.memory_space<vmem>>, vector<16x16xf32>
      %13 = arith.maximumf %12, %5 : vector<16x16xf32>
      %c0_10 = arith.constant 0 : index
      %c0_11 = arith.constant 0 : index
      %14 = vector.load %arg4[%c0_10, %c0_11] : memref<16x16xf32, #tpu.memory_space<vmem>>, vector<16x16xf32>
      tpu.vector_store %arg4[%c0_10, %c0_11], %13 {strides = array<i32>} : memref<16x16xf32, #tpu.memory_space<vmem>>, vector<16x16xf32>,
    } else {
    }
    return
  }
  func.func @transform_0(%arg0: i32, %arg1: i32) -> (i32, i32, i32) {
    %c0_i32 = arith.constant 0 : i32
    %c0_i32_0 = arith.constant 0 : i32
    return %arg0, %arg1, %c0_i32 : i32, i32, i32
  }
  func.func @transform_1(%arg0: i32, %arg1: i32) -> (i32, i32) {
    %c0_i32 = arith.constant 0 : i32
    %c0_i32_0 = arith.constant 0 : i32
    %c0_i32_1 = arith.constant 0 : i32
    return %c0_i32, %c0_i32_0 : i32, i32
  }
  func.func @transform_2(%arg0: i32, %arg1: i32) -> (i32, i32) {
    %c0_i32 = arith.constant 0 : i32
    %c0_i32_0 = arith.constant 0 : i32
    return %arg0, %c0_i32 : i32, i32
  }
}

</mosaic_0001>

<llo_original>
// kernel: tpu_custom_call.1
$region0: #{tpu_custom_call.1}
  #allocation0 [shape = 'u32[]', space=smem, size = 0x4, offset = 0x4, fixed_abs, tag = 'smem constant byte address 0x4 - core index']
  #allocation1 [shape = 'u32[144,128]{1,0:T(1,128)}', space=vmem, size = 0x12000, scoped, tag = 'internal scratch']
  %s0 = inlined_call_operand.vmem [shape: bf16[16,64,11], index: 0, kind: input, shape index: {}]
  %s1 = inlined_call_operand.vmem [shape: bf16[11,16], index: 1, kind: input, shape index: {}]
  %s2 = inlined_call_operand.hbm [shape: f32[16,16], index: 2, kind: output, shape index: {}]
  %s3 = sld [smem:[#allocation0]]
  $region26: #{tpu_custom_call.1} parent=0
    _
  %s5 = ssub.s32 1, %s3
  %s6 = scalar_select 0, %s5, %s3
  $region1: #{tpu_custom_call.1} parent=0
    #allocation2 [shape = 'u8[8192]{0}', space=vmem, size = 0x2000, scoped, tag = 'output window, operand 0, single buffered']
    #allocation3 [shape = 's32[1]{0}', space=sflag, size = 0x4, scoped, tag = 'scoped memory for tpu_custom_call.1']
    %7 = vsyncpa [#allocation3], 0
    // Predicated region
    $region2: #{tpu_custom_call.1} parent=1 // pred_check
      _
    $region3: #{tpu_custom_call.1} parent=1 // pred_check_branch
      %9 = sbr.rel (0) target = $region5
    $region4: #{tpu_custom_call.1} parent=1 // pred_region
      _
    $region5: #{tpu_custom_call.1} parent=1 // pred_fallthru
      _
    // Predicated region
    $region6: #{tpu_custom_call.1} parent=1 // pred_check
      _
    $region7: #{tpu_custom_call.1} parent=1 // pred_check_branch
      %11 = sbr.rel (0) target = $region9
    $region8: #{tpu_custom_call.1} parent=1 // pred_region
      _
    $region9: #{tpu_custom_call.1} parent=1 // pred_fallthru
      _
    %v13 = vld [vmem:[%s0] sm:$0xf]
    %v14 = vld [vmem:[%s0 + $0x4] sm:$0xf]
    %v15 = vld [vmem:[%s0 + $0x8] sm:$0xf]
    %v16 = vld [vmem:[%s0 + $0xc] sm:$0xf]
    %v17 = vld [vmem:[%s0 + $0x10] sm:$0xf]
    %v18 = vld [vmem:[%s0 + $0x14] sm:$0xf]
    %v19 = vld [vmem:[%s0 + $0x18] sm:$0xf]
    %v20 = vld [vmem:[%s0 + $0x1c] sm:$0xf]
    %v21 = vld [vmem:[%s0 + $0x20] sm:$0xf]
    %v22 = vld [vmem:[%s0 + $0x24] sm:$0xf]
    %v23 = vld [vmem:[%s0 + $0x28] sm:$0xf]
    %v24 = vld [vmem:[%s0 + $0x2c] sm:$0xf]
    %v25 = vld [vmem:[%s0 + $0x30] sm:$0xf]
    %v26 = vld [vmem:[%s0 + $0x34] sm:$0xf]
    %v27 = vld [vmem:[%s0 + $0x38] sm:$0xf]
    %v28 = vld [vmem:[%s0 + $0x3c] sm:$0xf]
    %v29 = vld [vmem:[%s0 + $0x40] sm:$0xf]
    %v30 = vld [vmem:[%s0 + $0x44] sm:$0xf]
    %v31 = vld [vmem:[%s0 + $0x48] sm:$0xf]
    %v32 = vld [vmem:[%s0 + $0x4c] sm:$0xf]
    %v33 = vld [vmem:[%s0 + $0x50] sm:$0xf]
    %v34 = vld [vmem:[%s0 + $0x54] sm:$0xf]
    %v35 = vld [vmem:[%s0 + $0x58] sm:$0xf]
    %v36 = vld [vmem:[%s0 + $0x5c] sm:$0xf]
    %v37 = vld [vmem:[%s0 + $0x60] sm:$0xf]
    %v38 = vld [vmem:[%s0 + $0x64] sm:$0xf]
    %v39 = vld [vmem:[%s0 + $0x68] sm:$0xf]
    %v40 = vld [vmem:[%s0 + $0x6c] sm:$0xf]
    %v41 = vld [vmem:[%s0 + $0x70] sm:$0xf]
    %v42 = vld [vmem:[%s0 + $0x74] sm:$0xf]
    %v43 = vld [vmem:[%s0 + $0x78] sm:$0xf]
    %v44 = vld [vmem:[%s0 + $0x7c] sm:$0xf]
    %v45 = vld [vmem:[%s0 + $0x80] sm:$0xf]
    %v46 = vld [vmem:[%s0 + $0x84] sm:$0xf]
    %v47 = vld [vmem:[%s0 + $0x88] sm:$0xf]
    %v48 = vld [vmem:[%s0 + $0x8c] sm:$0xf]
    %v49 = vld [vmem:[%s0 + $0x90] sm:$0xf]
    %v50 = vld [vmem:[%s0 + $0x94] sm:$0xf]
    %v51 = vld [vmem:[%s0 + $0x98] sm:$0xf]
    %v52 = vld [vmem:[%s0 + $0x9c] sm:$0xf]
    %v53 = vld [vmem:[%s0 + $0xa0] sm:$0xf]
    %v54 = vld [vmem:[%s0 + $0xa4] sm:$0xf]
    %v55 = vld [vmem:[%s0 + $0xa8] sm:$0xf]
    %v56 = vld [vmem:[%s0 + $0xac] sm:$0xf]
    %v57 = vld [vmem:[%s0 + $0xb0] sm:$0xf]
    %v58 = vld [vmem:[%s0 + $0xb4] sm:$0xf]
    %v59 = vld [vmem:[%s0 + $0xb8] sm:$0xf]
    %v60 = vld [vmem:[%s0 + $0xbc] sm:$0xf]
    %v61 = vld [vmem:[%s0 + $0xc0] sm:$0xf]
    %v62 = vld [vmem:[%s0 + $0xc4] sm:$0xf]
    %v63 = vld [vmem:[%s0 + $0xc8] sm:$0xf]
    %v64 = vld [vmem:[%s0 + $0xcc] sm:$0xf]
    %v65 = vld [vmem:[%s0 + $0xd0] sm:$0xf]
    %v66 = vld [vmem:[%s0 + $0xd4] sm:$0xf]
    %v67 = vld [vmem:[%s0 + $0xd8] sm:$0xf]
    %v68 = vld [vmem:[%s0 + $0xdc] sm:$0xf]
    %v69 = vld [vmem:[%s0 + $0xe0] sm:$0xf]
    %v70 = vld [vmem:[%s0 + $0xe4] sm:$0xf]
    %v71 = vld [vmem:[%s0 + $0xe8] sm:$0xf]
    %v72 = vld [vmem:[%s0 + $0xec] sm:$0xf]
    %v73 = vld [vmem:[%s0 + $0xf0] sm:$0xf]
    %v74 = vld [vmem:[%s0 + $0xf4] sm:$0xf]
    %v75 = vld [vmem:[%s0 + $0xf8] sm:$0xf]
    %v76 = vld [vmem:[%s0 + $0xfc] sm:$0xf]
    %v77 = vld [vmem:[%s0 + $0x100] sm:$0xf]
    %v78 = vld [vmem:[%s0 + $0x104] sm:$0xf]
    %v79 = vld [vmem:[%s0 + $0x108] sm:$0xf]
    %v80 = vld [vmem:[%s0 + $0x10c] sm:$0xf]
    %v81 = vld [vmem:[%s0 + $0x110] sm:$0xf]
    %v82 = vld [vmem:[%s0 + $0x114] sm:$0xf]
    %v83 = vld [vmem:[%s0 + $0x118] sm:$0xf]
    %v84 = vld [vmem:[%s0 + $0x11c] sm:$0xf]
    %v85 = vld [vmem:[%s0 + $0x120] sm:$0xf]
    %v86 = vld [vmem:[%s0 + $0x124] sm:$0xf]
    %v87 = vld [vmem:[%s0 + $0x128] sm:$0xf]
    %v88 = vld [vmem:[%s0 + $0x12c] sm:$0xf]
    %v89 = vld [vmem:[%s0 + $0x130] sm:$0xf]
    %v90 = vld [vmem:[%s0 + $0x134] sm:$0xf]
    %v91 = vld [vmem:[%s0 + $0x138] sm:$0xf]
    %v92 = vld [vmem:[%s0 + $0x13c] sm:$0xf]
    %v93 = vld [vmem:[%s0 + $0x140] sm:$0xf]
    %v94 = vld [vmem:[%s0 + $0x144] sm:$0xf]
    %v95 = vld [vmem:[%s0 + $0x148] sm:$0xf]
    %v96 = vld [vmem:[%s0 + $0x14c] sm:$0xf]
    %v97 = vld [vmem:[%s0 + $0x150] sm:$0xf]
    %v98 = vld [vmem:[%s0 + $0x154] sm:$0xf]
    %v99 = vld [vmem:[%s0 + $0x158] sm:$0xf]
    %v100 = vld [vmem:[%s0 + $0x15c] sm:$0xf]
    %v101 = vld [vmem:[%s0 + $0x160] sm:$0xf]
    %v102 = vld [vmem:[%s0 + $0x164] sm:$0xf]
    %v103 = vld [vmem:[%s0 + $0x168] sm:$0xf]
    %v104 = vld [vmem:[%s0 + $0x16c] sm:$0xf]
    %v105 = vld [vmem:[%s0 + $0x170] sm:$0xf]
    %v106 = vld [vmem:[%s0 + $0x174] sm:$0xf]
    %v107 = vld [vmem:[%s0 + $0x178] sm:$0xf]
    %v108 = vld [vmem:[%s0 + $0x17c] sm:$0xf]
    %v109 = vld [vmem:[%s0 + $0x180] sm:$0xf]
    %v110 = vld [vmem:[%s0 + $0x184] sm:$0xf]
    %v111 = vld [vmem:[%s0 + $0x188] sm:$0xf]
    %v112 = vld [vmem:[%s0 + $0x18c] sm:$0xf]
    %v113 = vld [vmem:[%s0 + $0x190] sm:$0xf]
    %v114 = vld [vmem:[%s0 + $0x194] sm:$0xf]
    %v115 = vld [vmem:[%s0 + $0x198] sm:$0xf]
    %v116 = vld [vmem:[%s0 + $0x19c] sm:$0xf]
    %v117 = vld [vmem:[%s0 + $0x1a0] sm:$0xf]
    %v118 = vld [vmem:[%s0 + $0x1a4] sm:$0xf]
    %v119 = vld [vmem:[%s0 + $0x1a8] sm:$0xf]
    %v120 = vld [vmem:[%s0 + $0x1ac] sm:$0xf]
    %v121 = vld [vmem:[%s0 + $0x1b0] sm:$0xf]
    %v122 = vld [vmem:[%s0 + $0x1b4] sm:$0xf]
    %v123 = vld [vmem:[%s0 + $0x1b8] sm:$0xf]
    %v124 = vld [vmem:[%s0 + $0x1bc] sm:$0xf]
    %v125 = vld [vmem:[%s0 + $0x1c0] sm:$0xf]
    %v126 = vld [vmem:[%s0 + $0x1c4] sm:$0xf]
    %v127 = vld [vmem:[%s0 + $0x1c8] sm:$0xf]
    %v128 = vld [vmem:[%s0 + $0x1cc] sm:$0xf]
    %v129 = vld [vmem:[%s0 + $0x1d0] sm:$0xf]
    %v130 = vld [vmem:[%s0 + $0x1d4] sm:$0xf]
    %v131 = vld [vmem:[%s0 + $0x1d8] sm:$0xf]
    %v132 = vld [vmem:[%s0 + $0x1dc] sm:$0xf]
    %v133 = vld [vmem:[%s0 + $0x1e0] sm:$0xf]
    %v134 = vld [vmem:[%s0 + $0x1e4] sm:$0xf]
    %v135 = vld [vmem:[%s0 + $0x1e8] sm:$0xf]
    %v136 = vld [vmem:[%s0 + $0x1ec] sm:$0xf]
    %v137 = vld [vmem:[%s0 + $0x1f0] sm:$0xf]
    %v138 = vld [vmem:[%s0 + $0x1f4] sm:$0xf]
    %v139 = vld [vmem:[%s0 + $0x1f8] sm:$0xf]
    %v140 = vld [vmem:[%s0 + $0x1fc] sm:$0xf]
    %v141 = vld [vmem:[%s1] sm:$0xf]
    %v142 = vld [vmem:[%s1 + $0x4] sm:$0x3]
    %v271 = vunpack.c.l.b16 %v13
    %v272 = vunpack.c.l.b16 %v14
    %v273 = vunpack.c.l.b16 %v15
    %v274 = vunpack.c.l.b16 %v16
    %v275 = vunpack.c.l.b16 %v17
    %v276 = vunpack.c.l.b16 %v18
    %v277 = vunpack.c.l.b16 %v19
    %v278 = vunpack.c.l.b16 %v20
    %v279 = vunpack.c.l.b16 %v21
    %v280 = vunpack.c.l.b16 %v22
    %v281 = vunpack.c.l.b16 %v23
    %v282 = vunpack.c.l.b16 %v24
    %v283 = vunpack.c.l.b16 %v25
    %v284 = vunpack.c.l.b16 %v26
    %v285 = vunpack.c.l.b16 %v27
    %v286 = vunpack.c.l.b16 %v28
    %v287 = vunpack.c.l.b16 %v29
    %v288 = vunpack.c.l.b16 %v30
    %v289 = vunpack.c.l.b16 %v31
    %v290 = vunpack.c.l.b16 %v32
    %v291 = vunpack.c.l.b16 %v33
    %v292 = vunpack.c.l.b16 %v34
    %v293 = vunpack.c.l.b16 %v35
    %v294 = vunpack.c.l.b16 %v36
    %v295 = vunpack.c.l.b16 %v37
    %v296 = vunpack.c.l.b16 %v38
    %v297 = vunpack.c.l.b16 %v39
    %v298 = vunpack.c.l.b16 %v40
    %v299 = vunpack.c.l.b16 %v41
    %v300 = vunpack.c.l.b16 %v42
    %v301 = vunpack.c.l.b16 %v43
    %v302 = vunpack.c.l.b16 %v44
    %v303 = vunpack.c.l.b16 %v45
    %v304 = vunpack.c.l.b16 %v46
    %v305 = vunpack.c.l.b16 %v47
    %v306 = vunpack.c.l.b16 %v48
    %v307 = vunpack.c.l.b16 %v49
    %v308 = vunpack.c.l.b16 %v50
    %v309 = vunpack.c.l.b16 %v51
    %v310 = vunpack.c.l.b16 %v52
    %v311 = vunpack.c.l.b16 %v53
    %v312 = vunpack.c.l.b16 %v54
    %v313 = vunpack.c.l.b16 %v55
    %v314 = vunpack.c.l.b16 %v56
    %v315 = vunpack.c.l.b16 %v57
    %v316 = vunpack.c.l.b16 %v58
    %v317 = vunpack.c.l.b16 %v59
    %v318 = vunpack.c.l.b16 %v60
    %v319 = vunpack.c.l.b16 %v61
    %v320 = vunpack.c.l.b16 %v62
    %v321 = vunpack.c.l.b16 %v63
    %v322 = vunpack.c.l.b16 %v64
    %v323 = vunpack.c.l.b16 %v65
    %v324 = vunpack.c.l.b16 %v66
    %v325 = vunpack.c.l.b16 %v67
    %v326 = vunpack.c.l.b16 %v68
    %v327 = vunpack.c.l.b16 %v69
    %v328 = vunpack.c.l.b16 %v70
    %v329 = vunpack.c.l.b16 %v71
    %v330 = vunpack.c.l.b16 %v72
    %v331 = vunpack.c.l.b16 %v73
    %v332 = vunpack.c.l.b16 %v74
    %v333 = vunpack.c.l.b16 %v75
    %v334 = vunpack.c.l.b16 %v76
    %v335 = vunpack.c.l.b16 %v77
    %v336 = vunpack.c.l.b16 %v78
    %v337 = vunpack.c.l.b16 %v79
    %v338 = vunpack.c.l.b16 %v80
    %v339 = vunpack.c.l.b16 %v81
    %v340 = vunpack.c.l.b16 %v82
    %v341 = vunpack.c.l.b16 %v83
    %v342 = vunpack.c.l.b16 %v84
    %v343 = vunpack.c.l.b16 %v85
    %v344 = vunpack.c.l.b16 %v86
    %v345 = vunpack.c.l.b16 %v87
    %v346 = vunpack.c.l.b16 %v88
    %v347 = vunpack.c.l.b16 %v89
    %v348 = vunpack.c.l.b16 %v90
    %v349 = vunpack.c.l.b16 %v91
    %v350 = vunpack.c.l.b16 %v92
    %v351 = vunpack.c.l.b16 %v93
    %v352 = vunpack.c.l.b16 %v94
    %v353 = vunpack.c.l.b16 %v95
    %v354 = vunpack.c.l.b16 %v96
    %v355 = vunpack.c.l.b16 %v97
    %v356 = vunpack.c.l.b16 %v98
    %v357 = vunpack.c.l.b16 %v99
    %v358 = vunpack.c.l.b16 %v100
    %v359 = vunpack.c.l.b16 %v101
    %v360 = vunpack.c.l.b16 %v102
    %v361 = vunpack.c.l.b16 %v103
    %v362 = vunpack.c.l.b16 %v104
    %v363 = vunpack.c.l.b16 %v105
    %v364 = vunpack.c.l.b16 %v106
    %v365 = vunpack.c.l.b16 %v107
    %v366 = vunpack.c.l.b16 %v108
    %v367 = vunpack.c.l.b16 %v109
    %v368 = vunpack.c.l.b16 %v110
    %v369 = vunpack.c.l.b16 %v111
    %v370 = vunpack.c.l.b16 %v112
    %v371 = vunpack.c.l.b16 %v113
    %v372 = vunpack.c.l.b16 %v114
    %v373 = vunpack.c.l.b16 %v115
    %v374 = vunpack.c.l.b16 %v116
    %v375 = vunpack.c.l.b16 %v117
    %v376 = vunpack.c.l.b16 %v118
    %v377 = vunpack.c.l.b16 %v119
    %v378 = vunpack.c.l.b16 %v120
    %v379 = vunpack.c.l.b16 %v121
    %v380 = vunpack.c.l.b16 %v122
    %v381 = vunpack.c.l.b16 %v123
    %v382 = vunpack.c.l.b16 %v124
    %v383 = vunpack.c.l.b16 %v125
    %v384 = vunpack.c.l.b16 %v126
    %v385 = vunpack.c.l.b16 %v127
    %v386 = vunpack.c.l.b16 %v128
    %v387 = vunpack.c.l.b16 %v129
    %v388 = vunpack.c.l.b16 %v130
    %v389 = vunpack.c.l.b16 %v131
    %v390 = vunpack.c.l.b16 %v132
    %v391 = vunpack.c.l.b16 %v133
    %v392 = vunpack.c.l.b16 %v134
    %v393 = vunpack.c.l.b16 %v135
    %v394 = vunpack.c.l.b16 %v136
    %v395 = vunpack.c.l.b16 %v137
    %v396 = vunpack.c.l.b16 %v138
    %v397 = vunpack.c.l.b16 %v139
    %v398 = vunpack.c.l.b16 %v140
    %v399 = vpack.c.b16 %v272, %v271
    %v400 = vpack.c.b16 %v274, %v273
    %v401 = vpack.c.b16 %v276, %v275
    %v402 = vpack.c.b16 %v278, %v277
    %v403 = vpack.c.b16 %v280, %v279
    %v404 = vpack.c.b16 %v282, %v281
    %v405 = vpack.c.b16 %v284, %v283
    %v406 = vpack.c.b16 %v286, %v285
    %v407 = vpack.c.b16 %v288, %v287
    %v408 = vpack.c.b16 %v290, %v289
    %v409 = vpack.c.b16 %v292, %v291
    %v410 = vpack.c.b16 %v294, %v293
    %v411 = vpack.c.b16 %v296, %v295
    %v412 = vpack.c.b16 %v298, %v297
    %v413 = vpack.c.b16 %v300, %v299
    %v414 = vpack.c.b16 %v302, %v301
    %v415 = vpack.c.b16 %v304, %v303
    %v416 = vpack.c.b16 %v306, %v305
    %v417 = vpack.c.b16 %v308, %v307
    %v418 = vpack.c.b16 %v310, %v309
    %v419 = vpack.c.b16 %v312, %v311
    %v420 = vpack.c.b16 %v314, %v313
    %v421 = vpack.c.b16 %v316, %v315
    %v422 = vpack.c.b16 %v318, %v317
    %v423 = vpack.c.b16 %v320, %v319
    %v424 = vpack.c.b16 %v322, %v321
    %v425 = vpack.c.b16 %v324, %v323
    %v426 = vpack.c.b16 %v326, %v325
    %v427 = vpack.c.b16 %v328, %v327
    %v428 = vpack.c.b16 %v330, %v329
    %v429 = vpack.c.b16 %v332, %v331
    %v430 = vpack.c.b16 %v334, %v333
    %v431 = vpack.c.b16 %v336, %v335
    %v432 = vpack.c.b16 %v338, %v337
    %v433 = vpack.c.b16 %v340, %v339
    %v434 = vpack.c.b16 %v342, %v341
    %v435 = vpack.c.b16 %v344, %v343
    %v436 = vpack.c.b16 %v346, %v345
    %v437 = vpack.c.b16 %v348, %v347
    %v438 = vpack.c.b16 %v350, %v349
    %v439 = vpack.c.b16 %v352, %v351
    %v440 = vpack.c.b16 %v354, %v353
    %v441 = vpack.c.b16 %v356, %v355
    %v442 = vpack.c.b16 %v358, %v357
    %v443 = vpack.c.b16 %v360, %v359
    %v444 = vpack.c.b16 %v362, %v361
    %v445 = vpack.c.b16 %v364, %v363
    %v446 = vpack.c.b16 %v366, %v365
    %v447 = vpack.c.b16 %v368, %v367
    %v448 = vpack.c.b16 %v370, %v369
    %v449 = vpack.c.b16 %v372, %v371
    %v450 = vpack.c.b16 %v374, %v373
    %v451 = vpack.c.b16 %v376, %v375
    %v452 = vpack.c.b16 %v378, %v377
    %v453 = vpack.c.b16 %v380, %v379
    %v454 = vpack.c.b16 %v382, %v381
    %v455 = vpack.c.b16 %v384, %v383
    %v456 = vpack.c.b16 %v386, %v385
    %v457 = vpack.c.b16 %v388, %v387
    %v458 = vpack.c.b16 %v390, %v389
    %v459 = vpack.c.b16 %v392, %v391
    %v460 = vpack.c.b16 %v394, %v393
    %v461 = vpack.c.b16 %v396, %v395
    %v462 = vpack.c.b16 %v398, %v397
    %v465 = vunpack.c.l.b16 %v141
    %v466 = vunpack.c.l.b16 %v142
    %v467 = vpack.c.b16 %v466, %v465
    %vm468 = vcmask 89088
    %v470 = vsel %vm468, %v399, 0
    %v473 = vsel %vm468, %v400, 0
    %v476 = vsel %vm468, %v401, 0
    %v479 = vsel %vm468, %v402, 0
    %v482 = vsel %vm468, %v403, 0
    %v485 = vsel %vm468, %v404, 0
    %v488 = vsel %vm468, %v405, 0
    %v491 = vsel %vm468, %v406, 0
    %v494 = vsel %vm468, %v407, 0
    %v497 = vsel %vm468, %v408, 0
    %v500 = vsel %vm468, %v409, 0
    %v503 = vsel %vm468, %v410, 0
    %v506 = vsel %vm468, %v411, 0
    %v509 = vsel %vm468, %v412, 0
    %v512 = vsel %vm468, %v413, 0
    %v515 = vsel %vm468, %v414, 0
    %v518 = vsel %vm468, %v415, 0
    %v521 = vsel %vm468, %v416, 0
    %v524 = vsel %vm468, %v417, 0
    %v527 = vsel %vm468, %v418, 0
    %v530 = vsel %vm468, %v419, 0
    %v533 = vsel %vm468, %v420, 0
    %v536 = vsel %vm468, %v421, 0
    %v539 = vsel %vm468, %v422, 0
    %v542 = vsel %vm468, %v423, 0
    %v545 = vsel %vm468, %v424, 0
    %v548 = vsel %vm468, %v425, 0
    %v551 = vsel %vm468, %v426, 0
    %v554 = vsel %vm468, %v427, 0
    %v557 = vsel %vm468, %v428, 0
    %v560 = vsel %vm468, %v429, 0
    %v563 = vsel %vm468, %v430, 0
    %v566 = vsel %vm468, %v431, 0
    %v569 = vsel %vm468, %v432, 0
    %v572 = vsel %vm468, %v433, 0
    %v575 = vsel %vm468, %v434, 0
    %v578 = vsel %vm468, %v435, 0
    %v581 = vsel %vm468, %v436, 0
    %v584 = vsel %vm468, %v437, 0
    %v587 = vsel %vm468, %v438, 0
    %v590 = vsel %vm468, %v439, 0
    %v593 = vsel %vm468, %v440, 0
    %v596 = vsel %vm468, %v441, 0
    %v599 = vsel %vm468, %v442, 0
    %v602 = vsel %vm468, %v443, 0
    %v605 = vsel %vm468, %v444, 0
    %v608 = vsel %vm468, %v445, 0
    %v611 = vsel %vm468, %v446, 0
    %v614 = vsel %vm468, %v447, 0
    %v617 = vsel %vm468, %v448, 0
    %v620 = vsel %vm468, %v449, 0
    %v623 = vsel %vm468, %v450, 0
    %v626 = vsel %vm468, %v451, 0
    %v629 = vsel %vm468, %v452, 0
    %v632 = vsel %vm468, %v453, 0
    %v635 = vsel %vm468, %v454, 0
    %v638 = vsel %vm468, %v455, 0
    %v641 = vsel %vm468, %v456, 0
    %v644 = vsel %vm468, %v457, 0
    %v647 = vsel %vm468, %v458, 0
    %v650 = vsel %vm468, %v459, 0
    %v653 = vsel %vm468, %v460, 0
    %v656 = vsel %vm468, %v461, 0
    %v659 = vsel %vm468, %v462, 0
    %vm661 = vcmask 1044480
    %vm662 = vcmask 1045504
    %v663 = vsel %vm661, 4294967295, 65535
    %v664 = vsel %vm662, %v663, 0
    %v666 = vand.u32 %v467, %v664
    %668 = vmatprep.subr.bf16.mxu0 0
    %669 = vmatpush1.bf16.msra.mxu0 %v666
    %670 = vmatprep.subr.bf16.mxu0 0
    %671 = vmatpush1.bf16.msra.mxu0 0
    %672 = vmatprep.subr.bf16.mxu0 0
    %673 = vmatpush1.bf16.msra.mxu0 0
    %674 = vmatprep.subr.bf16.mxu0 0
    %675 = vmatpush1.bf16.msra.mxu0 0
    %676 = vmatprep.subr.bf16.mxu0 0
    %677 = vmatpush1.bf16.msra.mxu0 0
    %678 = vmatprep.subr.bf16.mxu0 0
    %679 = vmatpush1.bf16.msra.mxu0 0
    %680 = vmatprep.subr.bf16.mxu0 0
    %681 = vmatpush1.bf16.msra.mxu0 0
    %682 = vmatprep.subr.bf16.mxu0 0
    %683 = vmatpush1.bf16.msra.mxu0 0
    %684 = vmatprep.subr.bf16.mxu0 0
    %685 = vmatpush1.bf16.msra.mxu0 0
    %686 = vmatprep.subr.bf16.mxu0 0
    %687 = vmatpush1.bf16.msra.mxu0 0
    %688 = vmatprep.subr.bf16.mxu0 0
    %689 = vmatpush1.bf16.msra.mxu0 0
    %690 = vmatprep.subr.bf16.mxu0 0
    %691 = vmatpush1.bf16.msra.mxu0 0
    %692 = vmatprep.subr.bf16.mxu0 0
    %693 = vmatpush1.bf16.msra.mxu0 0
    %694 = vmatprep.subr.bf16.mxu0 0
    %695 = vmatpush1.bf16.msra.mxu0 0
    %696 = vmatprep.subr.bf16.mxu0 0
    %697 = vmatpush1.bf16.msra.mxu0 0
    %698 = vmatprep.subr.bf16.mxu0 0
    %699 = vmatpush1.bf16.msra.mxu0 0
    %700 = vmatprep.mubr.bf16.mxu0 0
    %701 = vmatmul.mubr.bf16.gmra.mrb[0].mxu0 %v470
    %v702 = vpop.f32.mrb[0].mxu0
    %v703 = vadd.f32 0.0, %v702
    %v704 = vpop.f32.mrb[0].mxu0
    %v705 = vpop.f32.mrb[0].mxu0
    %v706 = vadd.f32 0.0, %v705
    %v707 = vpop.f32.mrb[0].mxu0
    %708 = vmatprep.mubr.bf16.mxu0 0
    %709 = vmatmul.mubr.bf16.gmra.mrb[0].mxu0 %v473
    %v710 = vpop.f32.mrb[0].mxu0
    %v711 = vadd.f32 0.0, %v710
    %v712 = vpop.f32.mrb[0].mxu0
    %v713 = vpop.f32.mrb[0].mxu0
    %v714 = vadd.f32 0.0, %v713
    %v715 = vpop.f32.mrb[0].mxu0
    %716 = vmatprep.mubr.bf16.mxu0 0
    %717 = vmatmul.mubr.bf16.gmra.mrb[0].mxu0 %v476
    %v718 = vpop.f32.mrb[0].mxu0
    %v719 = vadd.f32 0.0, %v718
    %v720 = vpop.f32.mrb[0].mxu0
    %v721 = vpop.f32.mrb[0].mxu0
    %v722 = vadd.f32 0.0, %v721
    %v723 = vpop.f32.mrb[0].mxu0
    %724 = vmatprep.mubr.bf16.mxu0 0
    %725 = vmatmul.mubr.bf16.gmra.mrb[0].mxu0 %v479
    %v726 = vpop.f32.mrb[0].mxu0
    %v727 = vadd.f32 0.0, %v726
    %v728 = vpop.f32.mrb[0].mxu0
    %v729 = vpop.f32.mrb[0].mxu0
    %v730 = vadd.f32 0.0, %v729
    %v731 = vpop.f32.mrb[0].mxu0
    %732 = vmatprep.mubr.bf16.mxu0 0
    %733 = vmatmul.mubr.bf16.gmra.mrb[0].mxu0 %v482
    %v734 = vpop.f32.mrb[0].mxu0
    %v735 = vadd.f32 0.0, %v734
    %v736 = vpop.f32.mrb[0].mxu0
    %v737 = vpop.f32.mrb[0].mxu0
    %v738 = vadd.f32 0.0, %v737
    %v739 = vpop.f32.mrb[0].mxu0
    %740 = vmatprep.mubr.bf16.mxu0 0
    %741 = vmatmul.mubr.bf16.gmra.mrb[0].mxu0 %v485
    %v742 = vpop.f32.mrb[0].mxu0
    %v743 = vadd.f32 0.0, %v742
    %v744 = vpop.f32.mrb[0].mxu0
    %v745 = vpop.f32.mrb[0].mxu0
    %v746 = vadd.f32 0.0, %v745
    %v747 = vpop.f32.mrb[0].mxu0
    %748 = vmatprep.mubr.bf16.mxu0 0
    %749 = vmatmul.mubr.bf16.gmra.mrb[0].mxu0 %v488
    %v750 = vpop.f32.mrb[0].mxu0
    %v751 = vadd.f32 0.0, %v750
    %v752 = vpop.f32.mrb[0].mxu0
    %v753 = vpop.f32.mrb[0].mxu0
    %v754 = vadd.f32 0.0, %v753
    %v755 = vpop.f32.mrb[0].mxu0
    %756 = vmatprep.mubr.bf16.mxu0 0
    %757 = vmatmul.mubr.bf16.gmra.mrb[0].mxu0 %v491
    %v758 = vpop.f32.mrb[0].mxu0
    %v759 = vadd.f32 0.0, %v758
    %v760 = vpop.f32.mrb[0].mxu0
    %v761 = vpop.f32.mrb[0].mxu0
    %v762 = vadd.f32 0.0, %v761
    %v763 = vpop.f32.mrb[0].mxu0
    %764 = vmatprep.mubr.bf16.mxu0 0
    %765 = vmatmul.mubr.bf16.gmra.mrb[0].mxu0 %v494
    %v766 = vpop.f32.mrb[0].mxu0
    %v767 = vadd.f32 0.0, %v766
    %v768 = vpop.f32.mrb[0].mxu0
    %v769 = vpop.f32.mrb[0].mxu0
    %v770 = vadd.f32 0.0, %v769
    %v771 = vpop.f32.mrb[0].mxu0
    %772 = vmatprep.mubr.bf16.mxu0 0
    %773 = vmatmul.mubr.bf16.gmra.mrb[0].mxu0 %v497
    %v774 = vpop.f32.mrb[0].mxu0
    %v775 = vadd.f32 0.0, %v774
    %v776 = vpop.f32.mrb[0].mxu0
    %v777 = vpop.f32.mrb[0].mxu0
    %v778 = vadd.f32 0.0, %v777
    %v779 = vpop.f32.mrb[0].mxu0
    %780 = vmatprep.mubr.bf16.mxu0 0
    %781 = vmatmul.mubr.bf16.gmra.mrb[0].mxu0 %v500
    %v782 = vpop.f32.mrb[0].mxu0
    %v783 = vadd.f32 0.0, %v782
    %v784 = vpop.f32.mrb[0].mxu0
    %v785 = vpop.f32.mrb[0].mxu0
    %v786 = vadd.f32 0.0, %v785
    %v787 = vpop.f32.mrb[0].mxu0
    %788 = vmatprep.mubr.bf16.mxu0 0
    %789 = vmatmul.mubr.bf16.gmra.mrb[0].mxu0 %v503
    %v790 = vpop.f32.mrb[0].mxu0
    %v791 = vadd.f32 0.0, %v790
    %v792 = vpop.f32.mrb[0].mxu0
    %v793 = vpop.f32.mrb[0].mxu0
    %v794 = vadd.f32 0.0, %v793
    %v795 = vpop.f32.mrb[0].mxu0
    %796 = vmatprep.mubr.bf16.mxu0 0
    %797 = vmatmul.mubr.bf16.gmra.mrb[0].mxu0 %v506
    %v798 = vpop.f32.mrb[0].mxu0
    %v799 = vadd.f32 0.0, %v798
    %v800 = vpop.f32.mrb[0].mxu0
    %v801 = vpop.f32.mrb[0].mxu0
    %v802 = vadd.f32 0.0, %v801
    %v803 = vpop.f32.mrb[0].mxu0
    %804 = vmatprep.mubr.bf16.mxu0 0
    %805 = vmatmul.mubr.bf16.gmra.mrb[0].mxu0 %v509
    %v806 = vpop.f32.mrb[0].mxu0
    %v807 = vadd.f32 0.0, %v806
    %v808 = vpop.f32.mrb[0].mxu0
    %v809 = vpop.f32.mrb[0].mxu0
    %v810 = vadd.f32 0.0, %v809
    %v811 = vpop.f32.mrb[0].mxu0
    %812 = vmatprep.mubr.bf16.mxu0 0
    %813 = vmatmul.mubr.bf16.gmra.mrb[0].mxu0 %v512
    %v814 = vpop.f32.mrb[0].mxu0
    %v815 = vadd.f32 0.0, %v814
    %v816 = vpop.f32.mrb[0].mxu0
    %v817 = vpop.f32.mrb[0].mxu0
    %v818 = vadd.f32 0.0, %v817
    %v819 = vpop.f32.mrb[0].mxu0
    %820 = vmatprep.mubr.bf16.mxu0 0
    %821 = vmatmul.mubr.bf16.gmra.mrb[0].mxu0 %v515
    %v822 = vpop.f32.mrb[0].mxu0
    %v823 = vadd.f32 0.0, %v822
    %v824 = vpop.f32.mrb[0].mxu0
    %v825 = vpop.f32.mrb[0].mxu0
    %v826 = vadd.f32 0.0, %v825
    %v827 = vpop.f32.mrb[0].mxu0
    %828 = vmatprep.mubr.bf16.mxu0 0
    %829 = vmatmul.mubr.bf16.gmra.mrb[0].mxu0 %v518
    %v830 = vpop.f32.mrb[0].mxu0
    %v831 = vadd.f32 0.0, %v830
    %v832 = vpop.f32.mrb[0].mxu0
    %v833 = vpop.f32.mrb[0].mxu0
    %v834 = vadd.f32 0.0, %v833
    %v835 = vpop.f32.mrb[0].mxu0
    %836 = vmatprep.mubr.bf16.mxu0 0
    %837 = vmatmul.mubr.bf16.gmra.mrb[0].mxu0 %v521
    %v838 = vpop.f32.mrb[0].mxu0
    %v839 = vadd.f32 0.0, %v838
    %v840 = vpop.f32.mrb[0].mxu0
    %v841 = vpop.f32.mrb[0].mxu0
    %v842 = vadd.f32 0.0, %v841
    %v843 = vpop.f32.mrb[0].mxu0
    %844 = vmatprep.mubr.bf16.mxu0 0
    %845 = vmatmul.mubr.bf16.gmra.mrb[0].mxu0 %v524
    %v846 = vpop.f32.mrb[0].mxu0
    %v847 = vadd.f32 0.0, %v846
    %v848 = vpop.f32.mrb[0].mxu0
    %v849 = vpop.f32.mrb[0].mxu0
    %v850 = vadd.f32 0.0, %v849
    %v851 = vpop.f32.mrb[0].mxu0
    %852 = vmatprep.mubr.bf16.mxu0 0
    %853 = vmatmul.mubr.bf16.gmra.mrb[0].mxu0 %v527
    %v854 = vpop.f32.mrb[0].mxu0
    %v855 = vadd.f32 0.0, %v854
    %v856 = vpop.f32.mrb[0].mxu0
    %v857 = vpop.f32.mrb[0].mxu0
    %v858 = vadd.f32 0.0, %v857
    %v859 = vpop.f32.mrb[0].mxu0
    %860 = vmatprep.mubr.bf16.mxu0 0
    %861 = vmatmul.mubr.bf16.gmra.mrb[0].mxu0 %v530
    %v862 = vpop.f32.mrb[0].mxu0
    %v863 = vadd.f32 0.0, %v862
    %v864 = vpop.f32.mrb[0].mxu0
    %v865 = vpop.f32.mrb[0].mxu0
    %v866 = vadd.f32 0.0, %v865
    %v867 = vpop.f32.mrb[0].mxu0
    %868 = vmatprep.mubr.bf16.mxu0 0
    %869 = vmatmul.mubr.bf16.gmra.mrb[0].mxu0 %v533
    %v870 = vpop.f32.mrb[0].mxu0
    %v871 = vadd.f32 0.0, %v870
    %v872 = vpop.f32.mrb[0].mxu0
    %v873 = vpop.f32.mrb[0].mxu0
    %v874 = vadd.f32 0.0, %v873
    %v875 = vpop.f32.mrb[0].mxu0
    %876 = vmatprep.mubr.bf16.mxu0 0
    %877 = vmatmul.mubr.bf16.gmra.mrb[0].mxu0 %v536
    %v878 = vpop.f32.mrb[0].mxu0
    %v879 = vadd.f32 0.0, %v878
    %v880 = vpop.f32.mrb[0].mxu0
    %v881 = vpop.f32.mrb[0].mxu0
    %v882 = vadd.f32 0.0, %v881
    %v883 = vpop.f32.mrb[0].mxu0
    %884 = vmatprep.mubr.bf16.mxu0 0
    %885 = vmatmul.mubr.bf16.gmra.mrb[0].mxu0 %v539
    %v886 = vpop.f32.mrb[0].mxu0
    %v887 = vadd.f32 0.0, %v886
    %v888 = vpop.f32.mrb[0].mxu0
    %v889 = vpop.f32.mrb[0].mxu0
    %v890 = vadd.f32 0.0, %v889
    %v891 = vpop.f32.mrb[0].mxu0
    %892 = vmatprep.mubr.bf16.mxu0 0
    %893 = vmatmul.mubr.bf16.gmra.mrb[0].mxu0 %v542
    %v894 = vpop.f32.mrb[0].mxu0
    %v895 = vadd.f32 0.0, %v894
    %v896 = vpop.f32.mrb[0].mxu0
    %v897 = vpop.f32.mrb[0].mxu0
    %v898 = vadd.f32 0.0, %v897
    %v899 = vpop.f32.mrb[0].mxu0
    %900 = vmatprep.mubr.bf16.mxu0 0
    %901 = vmatmul.mubr.bf16.gmra.mrb[0].mxu0 %v545
    %v902 = vpop.f32.mrb[0].mxu0
    %v903 = vadd.f32 0.0, %v902
    %v904 = vpop.f32.mrb[0].mxu0
    %v905 = vpop.f32.mrb[0].mxu0
    %v906 = vadd.f32 0.0, %v905
    %v907 = vpop.f32.mrb[0].mxu0
    %908 = vmatprep.mubr.bf16.mxu0 0
    %909 = vmatmul.mubr.bf16.gmra.mrb[0].mxu0 %v548
    %v910 = vpop.f32.mrb[0].mxu0
    %v911 = vadd.f32 0.0, %v910
    %v912 = vpop.f32.mrb[0].mxu0
    %v913 = vpop.f32.mrb[0].mxu0
    %v914 = vadd.f32 0.0, %v913
    %v915 = vpop.f32.mrb[0].mxu0
    %916 = vmatprep.mubr.bf16.mxu0 0
    %917 = vmatmul.mubr.bf16.gmra.mrb[0].mxu0 %v551
    %v918 = vpop.f32.mrb[0].mxu0
    %v919 = vadd.f32 0.0, %v918
    %v920 = vpop.f32.mrb[0].mxu0
    %v921 = vpop.f32.mrb[0].mxu0
    %v922 = vadd.f32 0.0, %v921
    %v923 = vpop.f32.mrb[0].mxu0
    %924 = vmatprep.mubr.bf16.mxu0 0
    %925 = vmatmul.mubr.bf16.gmra.mrb[0].mxu0 %v554
    %v926 = vpop.f32.mrb[0].mxu0
    %v927 = vadd.f32 0.0, %v926
    %v928 = vpop.f32.mrb[0].mxu0
    %v929 = vpop.f32.mrb[0].mxu0
    %v930 = vadd.f32 0.0, %v929
    %v931 = vpop.f32.mrb[0].mxu0
    %932 = vmatprep.mubr.bf16.mxu0 0
    %933 = vmatmul.mubr.bf16.gmra.mrb[0].mxu0 %v557
    %v934 = vpop.f32.mrb[0].mxu0
    %v935 = vadd.f32 0.0, %v934
    %v936 = vpop.f32.mrb[0].mxu0
    %v937 = vpop.f32.mrb[0].mxu0
    %v938 = vadd.f32 0.0, %v937
    %v939 = vpop.f32.mrb[0].mxu0
    %940 = vmatprep.mubr.bf16.mxu0 0
    %941 = vmatmul.mubr.bf16.gmra.mrb[0].mxu0 %v560
    %v942 = vpop.f32.mrb[0].mxu0
    %v943 = vadd.f32 0.0, %v942
    %v944 = vpop.f32.mrb[0].mxu0
    %v945 = vpop.f32.mrb[0].mxu0
    %v946 = vadd.f32 0.0, %v945
    %v947 = vpop.f32.mrb[0].mxu0
    %948 = vmatprep.mubr.bf16.mxu0 0
    %949 = vmatmul.mubr.bf16.gmra.mrb[0].mxu0 %v563
    %v950 = vpop.f32.mrb[0].mxu0
    %v951 = vadd.f32 0.0, %v950
    %v952 = vpop.f32.mrb[0].mxu0
    %v953 = vpop.f32.mrb[0].mxu0
    %v954 = vadd.f32 0.0, %v953
    %v955 = vpop.f32.mrb[0].mxu0
    %956 = vmatprep.mubr.bf16.mxu0 0
    %957 = vmatmul.mubr.bf16.gmra.mrb[0].mxu0 %v566
    %v958 = vpop.f32.mrb[0].mxu0
    %v959 = vadd.f32 0.0, %v958
    %v960 = vpop.f32.mrb[0].mxu0
    %v961 = vpop.f32.mrb[0].mxu0
    %v962 = vadd.f32 0.0, %v961
    %v963 = vpop.f32.mrb[0].mxu0
    %964 = vmatprep.mubr.bf16.mxu0 0
    %965 = vmatmul.mubr.bf16.gmra.mrb[0].mxu0 %v569
    %v966 = vpop.f32.mrb[0].mxu0
    %v967 = vadd.f32 0.0, %v966
    %v968 = vpop.f32.mrb[0].mxu0
    %v969 = vpop.f32.mrb[0].mxu0
    %v970 = vadd.f32 0.0, %v969
    %v971 = vpop.f32.mrb[0].mxu0
    %972 = vmatprep.mubr.bf16.mxu0 0
    %973 = vmatmul.mubr.bf16.gmra.mrb[0].mxu0 %v572
    %v974 = vpop.f32.mrb[0].mxu0
    %v975 = vadd.f32 0.0, %v974
    %v976 = vpop.f32.mrb[0].mxu0
    %v977 = vpop.f32.mrb[0].mxu0
    %v978 = vadd.f32 0.0, %v977
    %v979 = vpop.f32.mrb[0].mxu0
    %980 = vmatprep.mubr.bf16.mxu0 0
    %981 = vmatmul.mubr.bf16.gmra.mrb[0].mxu0 %v575
    %v982 = vpop.f32.mrb[0].mxu0
    %v983 = vadd.f32 0.0, %v982
    %v984 = vpop.f32.mrb[0].mxu0
    %v985 = vpop.f32.mrb[0].mxu0
    %v986 = vadd.f32 0.0, %v985
    %v987 = vpop.f32.mrb[0].mxu0
    %988 = vmatprep.mubr.bf16.mxu0 0
    %989 = vmatmul.mubr.bf16.gmra.mrb[0].mxu0 %v578
    %v990 = vpop.f32.mrb[0].mxu0
    %v991 = vadd.f32 0.0, %v990
    %v992 = vpop.f32.mrb[0].mxu0
    %v993 = vpop.f32.mrb[0].mxu0
    %v994 = vadd.f32 0.0, %v993
    %v995 = vpop.f32.mrb[0].mxu0
    %996 = vmatprep.mubr.bf16.mxu0 0
    %997 = vmatmul.mubr.bf16.gmra.mrb[0].mxu0 %v581
    %v998 = vpop.f32.mrb[0].mxu0
    %v999 = vadd.f32 0.0, %v998
    %v1000 = vpop.f32.mrb[0].mxu0
    %v1001 = vpop.f32.mrb[0].mxu0
    %v1002 = vadd.f32 0.0, %v1001
    %v1003 = vpop.f32.mrb[0].mxu0
    %1004 = vmatprep.mubr.bf16.mxu0 0
    %1005 = vmatmul.mubr.bf16.gmra.mrb[0].mxu0 %v584
    %v1006 = vpop.f32.mrb[0].mxu0
    %v1007 = vadd.f32 0.0, %v1006
    %v1008 = vpop.f32.mrb[0].mxu0
    %v1009 = vpop.f32.mrb[0].mxu0
    %v1010 = vadd.f32 0.0, %v1009
    %v1011 = vpop.f32.mrb[0].mxu0
    %1012 = vmatprep.mubr.bf16.mxu0 0
    %1013 = vmatmul.mubr.bf16.gmra.mrb[0].mxu0 %v587
    %v1014 = vpop.f32.mrb[0].mxu0
    %v1015 = vadd.f32 0.0, %v1014
    %v1016 = vpop.f32.mrb[0].mxu0
    %v1017 = vpop.f32.mrb[0].mxu0
    %v1018 = vadd.f32 0.0, %v1017
    %v1019 = vpop.f32.mrb[0].mxu0
    %1020 = vmatprep.mubr.bf16.mxu0 0
    %1021 = vmatmul.mubr.bf16.gmra.mrb[0].mxu0 %v590
    %v1022 = vpop.f32.mrb[0].mxu0
    %v1023 = vadd.f32 0.0, %v1022
    %v1024 = vpop.f32.mrb[0].mxu0
    %v1025 = vpop.f32.mrb[0].mxu0
    %v1026 = vadd.f32 0.0, %v1025
    %v1027 = vpop.f32.mrb[0].mxu0
    %1028 = vmatprep.mubr.bf16.mxu0 0
    %1029 = vmatmul.mubr.bf16.gmra.mrb[0].mxu0 %v593
    %v1030 = vpop.f32.mrb[0].mxu0
    %v1031 = vadd.f32 0.0, %v1030
    %v1032 = vpop.f32.mrb[0].mxu0
    %v1033 = vpop.f32.mrb[0].mxu0
    %v1034 = vadd.f32 0.0, %v1033
    %v1035 = vpop.f32.mrb[0].mxu0
    %1036 = vmatprep.mubr.bf16.mxu0 0
    %1037 = vmatmul.mubr.bf16.gmra.mrb[0].mxu0 %v596
    %v1038 = vpop.f32.mrb[0].mxu0
    %v1039 = vadd.f32 0.0, %v1038
    %v1040 = vpop.f32.mrb[0].mxu0
    %v1041 = vpop.f32.mrb[0].mxu0
    %v1042 = vadd.f32 0.0, %v1041
    %v1043 = vpop.f32.mrb[0].mxu0
    %1044 = vmatprep.mubr.bf16.mxu0 0
    %1045 = vmatmul.mubr.bf16.gmra.mrb[0].mxu0 %v599
    %v1046 = vpop.f32.mrb[0].mxu0
    %v1047 = vadd.f32 0.0, %v1046
    %v1048 = vpop.f32.mrb[0].mxu0
    %v1049 = vpop.f32.mrb[0].mxu0
    %v1050 = vadd.f32 0.0, %v1049
    %v1051 = vpop.f32.mrb[0].mxu0
    %1052 = vmatprep.mubr.bf16.mxu0 0
    %1053 = vmatmul.mubr.bf16.gmra.mrb[0].mxu0 %v602
    %v1054 = vpop.f32.mrb[0].mxu0
    %v1055 = vadd.f32 0.0, %v1054
    %v1056 = vpop.f32.mrb[0].mxu0
    %v1057 = vpop.f32.mrb[0].mxu0
    %v1058 = vadd.f32 0.0, %v1057
    %v1059 = vpop.f32.mrb[0].mxu0
    %1060 = vmatprep.mubr.bf16.mxu0 0
    %1061 = vmatmul.mubr.bf16.gmra.mrb[0].mxu0 %v605
    %v1062 = vpop.f32.mrb[0].mxu0
    %v1063 = vadd.f32 0.0, %v1062
    %v1064 = vpop.f32.mrb[0].mxu0
    %v1065 = vpop.f32.mrb[0].mxu0
    %v1066 = vadd.f32 0.0, %v1065
    %v1067 = vpop.f32.mrb[0].mxu0
    %1068 = vmatprep.mubr.bf16.mxu0 0
    %1069 = vmatmul.mubr.bf16.gmra.mrb[0].mxu0 %v608
    %v1070 = vpop.f32.mrb[0].mxu0
    %v1071 = vadd.f32 0.0, %v1070
    %v1072 = vpop.f32.mrb[0].mxu0
    %v1073 = vpop.f32.mrb[0].mxu0
    %v1074 = vadd.f32 0.0, %v1073
    %v1075 = vpop.f32.mrb[0].mxu0
    %1076 = vmatprep.mubr.bf16.mxu0 0
    %1077 = vmatmul.mubr.bf16.gmra.mrb[0].mxu0 %v611
    %v1078 = vpop.f32.mrb[0].mxu0
    %v1079 = vadd.f32 0.0, %v1078
    %v1080 = vpop.f32.mrb[0].mxu0
    %v1081 = vpop.f32.mrb[0].mxu0
    %v1082 = vadd.f32 0.0, %v1081
    %v1083 = vpop.f32.mrb[0].mxu0
    %1084 = vmatprep.mubr.bf16.mxu0 0
    %1085 = vmatmul.mubr.bf16.gmra.mrb[0].mxu0 %v614
    %v1086 = vpop.f32.mrb[0].mxu0
    %v1087 = vadd.f32 0.0, %v1086
    %v1088 = vpop.f32.mrb[0].mxu0
    %v1089 = vpop.f32.mrb[0].mxu0
    %v1090 = vadd.f32 0.0, %v1089
    %v1091 = vpop.f32.mrb[0].mxu0
    %1092 = vmatprep.mubr.bf16.mxu0 0
    %1093 = vmatmul.mubr.bf16.gmra.mrb[0].mxu0 %v617
    %v1094 = vpop.f32.mrb[0].mxu0
    %v1095 = vadd.f32 0.0, %v1094
    %v1096 = vpop.f32.mrb[0].mxu0
    %v1097 = vpop.f32.mrb[0].mxu0
    %v1098 = vadd.f32 0.0, %v1097
    %v1099 = vpop.f32.mrb[0].mxu0
    %1100 = vmatprep.mubr.bf16.mxu0 0
    %1101 = vmatmul.mubr.bf16.gmra.mrb[0].mxu0 %v620
    %v1102 = vpop.f32.mrb[0].mxu0
    %v1103 = vadd.f32 0.0, %v1102
    %v1104 = vpop.f32.mrb[0].mxu0
    %v1105 = vpop.f32.mrb[0].mxu0
    %v1106 = vadd.f32 0.0, %v1105
    %v1107 = vpop.f32.mrb[0].mxu0
    %1108 = vmatprep.mubr.bf16.mxu0 0
    %1109 = vmatmul.mubr.bf16.gmra.mrb[0].mxu0 %v623
    %v1110 = vpop.f32.mrb[0].mxu0
    %v1111 = vadd.f32 0.0, %v1110
    %v1112 = vpop.f32.mrb[0].mxu0
    %v1113 = vpop.f32.mrb[0].mxu0
    %v1114 = vadd.f32 0.0, %v1113
    %v1115 = vpop.f32.mrb[0].mxu0
    %1116 = vmatprep.mubr.bf16.mxu0 0
    %1117 = vmatmul.mubr.bf16.gmra.mrb[0].mxu0 %v626
    %v1118 = vpop.f32.mrb[0].mxu0
    %v1119 = vadd.f32 0.0, %v1118
    %v1120 = vpop.f32.mrb[0].mxu0
    %v1121 = vpop.f32.mrb[0].mxu0
    %v1122 = vadd.f32 0.0, %v1121
    %v1123 = vpop.f32.mrb[0].mxu0
    %1124 = vmatprep.mubr.bf16.mxu0 0
    %1125 = vmatmul.mubr.bf16.gmra.mrb[0].mxu0 %v629
    %v1126 = vpop.f32.mrb[0].mxu0
    %v1127 = vadd.f32 0.0, %v1126
    %v1128 = vpop.f32.mrb[0].mxu0
    %v1129 = vpop.f32.mrb[0].mxu0
    %v1130 = vadd.f32 0.0, %v1129
    %v1131 = vpop.f32.mrb[0].mxu0
    %1132 = vmatprep.mubr.bf16.mxu0 0
    %1133 = vmatmul.mubr.bf16.gmra.mrb[0].mxu0 %v632
    %v1134 = vpop.f32.mrb[0].mxu0
    %v1135 = vadd.f32 0.0, %v1134
    %v1136 = vpop.f32.mrb[0].mxu0
    %v1137 = vpop.f32.mrb[0].mxu0
    %v1138 = vadd.f32 0.0, %v1137
    %v1139 = vpop.f32.mrb[0].mxu0
    %1140 = vmatprep.mubr.bf16.mxu0 0
    %1141 = vmatmul.mubr.bf16.gmra.mrb[0].mxu0 %v635
    %v1142 = vpop.f32.mrb[0].mxu0
    %v1143 = vadd.f32 0.0, %v1142
    %v1144 = vpop.f32.mrb[0].mxu0
    %v1145 = vpop.f32.mrb[0].mxu0
    %v1146 = vadd.f32 0.0, %v1145
    %v1147 = vpop.f32.mrb[0].mxu0
    %1148 = vmatprep.mubr.bf16.mxu0 0
    %1149 = vmatmul.mubr.bf16.gmra.mrb[0].mxu0 %v638
    %v1150 = vpop.f32.mrb[0].mxu0
    %v1151 = vadd.f32 0.0, %v1150
    %v1152 = vpop.f32.mrb[0].mxu0
    %v1153 = vpop.f32.mrb[0].mxu0
    %v1154 = vadd.f32 0.0, %v1153
    %v1155 = vpop.f32.mrb[0].mxu0
    %1156 = vmatprep.mubr.bf16.mxu0 0
    %1157 = vmatmul.mubr.bf16.gmra.mrb[0].mxu0 %v641
    %v1158 = vpop.f32.mrb[0].mxu0
    %v1159 = vadd.f32 0.0, %v1158
    %v1160 = vpop.f32.mrb[0].mxu0
    %v1161 = vpop.f32.mrb[0].mxu0
    %v1162 = vadd.f32 0.0, %v1161
    %v1163 = vpop.f32.mrb[0].mxu0
    %1164 = vmatprep.mubr.bf16.mxu0 0
    %1165 = vmatmul.mubr.bf16.gmra.mrb[0].mxu0 %v644
    %v1166 = vpop.f32.mrb[0].mxu0
    %v1167 = vadd.f32 0.0, %v1166
    %v1168 = vpop.f32.mrb[0].mxu0
    %v1169 = vpop.f32.mrb[0].mxu0
    %v1170 = vadd.f32 0.0, %v1169
    %v1171 = vpop.f32.mrb[0].mxu0
    %1172 = vmatprep.mubr.bf16.mxu0 0
    %1173 = vmatmul.mubr.bf16.gmra.mrb[0].mxu0 %v647
    %v1174 = vpop.f32.mrb[0].mxu0
    %v1175 = vadd.f32 0.0, %v1174
    %v1176 = vpop.f32.mrb[0].mxu0
    %v1177 = vpop.f32.mrb[0].mxu0
    %v1178 = vadd.f32 0.0, %v1177
    %v1179 = vpop.f32.mrb[0].mxu0
    %1180 = vmatprep.mubr.bf16.mxu0 0
    %1181 = vmatmul.mubr.bf16.gmra.mrb[0].mxu0 %v650
    %v1182 = vpop.f32.mrb[0].mxu0
    %v1183 = vadd.f32 0.0, %v1182
    %v1184 = vpop.f32.mrb[0].mxu0
    %v1185 = vpop.f32.mrb[0].mxu0
    %v1186 = vadd.f32 0.0, %v1185
    %v1187 = vpop.f32.mrb[0].mxu0
    %1188 = vmatprep.mubr.bf16.mxu0 0
    %1189 = vmatmul.mubr.bf16.gmra.mrb[0].mxu0 %v653
    %v1190 = vpop.f32.mrb[0].mxu0
    %v1191 = vadd.f32 0.0, %v1190
    %v1192 = vpop.f32.mrb[0].mxu0
    %v1193 = vpop.f32.mrb[0].mxu0
    %v1194 = vadd.f32 0.0, %v1193
    %v1195 = vpop.f32.mrb[0].mxu0
    %1196 = vmatprep.mubr.bf16.mxu0 0
    %1197 = vmatmul.mubr.bf16.gmra.mrb[0].mxu0 %v656
    %v1198 = vpop.f32.mrb[0].mxu0
    %v1199 = vadd.f32 0.0, %v1198
    %v1200 = vpop.f32.mrb[0].mxu0
    %v1201 = vpop.f32.mrb[0].mxu0
    %v1202 = vadd.f32 0.0, %v1201
    %v1203 = vpop.f32.mrb[0].mxu0
    %1204 = vmatprep.mubr.bf16.mxu0 0
    %1205 = vmatmul.mubr.bf16.gmra.mrb[0].mxu0 %v659
    %v1206 = vpop.f32.mrb[0].mxu0
    %v1207 = vadd.f32 0.0, %v1206
    %v1208 = vpop.f32.mrb[0].mxu0
    %v1209 = vpop.f32.mrb[0].mxu0
    %v1210 = vadd.f32 0.0, %v1209
    %v1211 = vpop.f32.mrb[0].mxu0
    %1212 = vdwg.mxu0
    %vm1213 = vcmask 130048
    %v1214 = vsel %vm1213, %v703, -inf
    %v1215 = vsel %vm1213, %v706, -inf
    %v1216 = vmax.f32 %v1214, %v1215
    %v1217 = vsel %vm1213, %v711, -inf
    %v1218 = vmax.f32 %v1216, %v1217
    %v1219 = vsel %vm1213, %v714, -inf
    %v1220 = vmax.f32 %v1218, %v1219
    %v1221 = vsel %vm1213, %v719, -inf
    %v1222 = vmax.f32 %v1220, %v1221
    %v1223 = vsel %vm1213, %v722, -inf
    %v1224 = vmax.f32 %v1222, %v1223
    %v1225 = vsel %vm1213, %v727, -inf
    %v1226 = vmax.f32 %v1224, %v1225
    %v1227 = vsel %vm1213, %v730, -inf
    %v1228 = vmax.f32 %v1226, %v1227
    %v1229 = vrot.slane %v1228, 4
    %v1230 = vmax.f32 %v1228, %v1229
    %v1231 = vrot.slane %v1230, 2
    %v1232 = vmax.f32 %v1230, %v1231
    %v1233 = vrot.slane %v1232, 1
    %v1234 = vmax.f32 %v1232, %v1233
    %v1235 = vsel %vm1213, %v735, -inf
    %v1236 = vsel %vm1213, %v738, -inf
    %v1237 = vmax.f32 %v1235, %v1236
    %v1238 = vsel %vm1213, %v743, -inf
    %v1239 = vmax.f32 %v1237, %v1238
    %v1240 = vsel %vm1213, %v746, -inf
    %v1241 = vmax.f32 %v1239, %v1240
    %v1242 = vsel %vm1213, %v751, -inf
    %v1243 = vmax.f32 %v1241, %v1242
    %v1244 = vsel %vm1213, %v754, -inf
    %v1245 = vmax.f32 %v1243, %v1244
    %v1246 = vsel %vm1213, %v759, -inf
    %v1247 = vmax.f32 %v1245, %v1246
    %v1248 = vsel %vm1213, %v762, -inf
    %v1249 = vmax.f32 %v1247, %v1248
    %v1250 = vrot.slane %v1249, 4
    %v1251 = vmax.f32 %v1249, %v1250
    %v1252 = vrot.slane %v1251, 2
    %v1253 = vmax.f32 %v1251, %v1252
    %v1254 = vrot.slane %v1253, 1
    %v1255 = vmax.f32 %v1253, %v1254
    %v1256 = vsel %vm1213, %v767, -inf
    %v1257 = vsel %vm1213, %v770, -inf
    %v1258 = vmax.f32 %v1256, %v1257
    %v1259 = vsel %vm1213, %v775, -inf
    %v1260 = vmax.f32 %v1258, %v1259
    %v1261 = vsel %vm1213, %v778, -inf
    %v1262 = vmax.f32 %v1260, %v1261
    %v1263 = vsel %vm1213, %v783, -inf
    %v1264 = vmax.f32 %v1262, %v1263
    %v1265 = vsel %vm1213, %v786, -inf
    %v1266 = vmax.f32 %v1264, %v1265
    %v1267 = vsel %vm1213, %v791, -inf
    %v1268 = vmax.f32 %v1266, %v1267
    %v1269 = vsel %vm1213, %v794, -inf
    %v1270 = vmax.f32 %v1268, %v1269
    %v1271 = vrot.slane %v1270, 4
    %v1272 = vmax.f32 %v1270, %v1271
    %v1273 = vrot.slane %v1272, 2
    %v1274 = vmax.f32 %v1272, %v1273
    %v1275 = vrot.slane %v1274, 1
    %v1276 = vmax.f32 %v1274, %v1275
    %v1277 = vsel %vm1213, %v799, -inf
    %v1278 = vsel %vm1213, %v802, -inf
    %v1279 = vmax.f32 %v1277, %v1278
    %v1280 = vsel %vm1213, %v807, -inf
    %v1281 = vmax.f32 %v1279, %v1280
    %v1282 = vsel %vm1213, %v810, -inf
    %v1283 = vmax.f32 %v1281, %v1282
    %v1284 = vsel %vm1213, %v815, -inf
    %v1285 = vmax.f32 %v1283, %v1284
    %v1286 = vsel %vm1213, %v818, -inf
    %v1287 = vmax.f32 %v1285, %v1286
    %v1288 = vsel %vm1213, %v823, -inf
    %v1289 = vmax.f32 %v1287, %v1288
    %v1290 = vsel %vm1213, %v826, -inf
    %v1291 = vmax.f32 %v1289, %v1290
    %v1292 = vrot.slane %v1291, 4
    %v1293 = vmax.f32 %v1291, %v1292
    %v1294 = vrot.slane %v1293, 2
    %v1295 = vmax.f32 %v1293, %v1294
    %v1296 = vrot.slane %v1295, 1
    %v1297 = vmax.f32 %v1295, %v1296
    %v1298 = vsel %vm1213, %v831, -inf
    %v1299 = vsel %vm1213, %v834, -inf
    %v1300 = vmax.f32 %v1298, %v1299
    %v1301 = vsel %vm1213, %v839, -inf
    %v1302 = vmax.f32 %v1300, %v1301
    %v1303 = vsel %vm1213, %v842, -inf
    %v1304 = vmax.f32 %v1302, %v1303
    %v1305 = vsel %vm1213, %v847, -inf
    %v1306 = vmax.f32 %v1304, %v1305
    %v1307 = vsel %vm1213, %v850, -inf
    %v1308 = vmax.f32 %v1306, %v1307
    %v1309 = vsel %vm1213, %v855, -inf
    %v1310 = vmax.f32 %v1308, %v1309
    %v1311 = vsel %vm1213, %v858, -inf
    %v1312 = vmax.f32 %v1310, %v1311
    %v1313 = vrot.slane %v1312, 4
    %v1314 = vmax.f32 %v1312, %v1313
    %v1315 = vrot.slane %v1314, 2
    %v1316 = vmax.f32 %v1314, %v1315
    %v1317 = vrot.slane %v1316, 1
    %v1318 = vmax.f32 %v1316, %v1317
    %v1319 = vsel %vm1213, %v863, -inf
    %v1320 = vsel %vm1213, %v866, -inf
    %v1321 = vmax.f32 %v1319, %v1320
    %v1322 = vsel %vm1213, %v871, -inf
    %v1323 = vmax.f32 %v1321, %v1322
    %v1324 = vsel %vm1213, %v874, -inf
    %v1325 = vmax.f32 %v1323, %v1324
    %v1326 = vsel %vm1213, %v879, -inf
    %v1327 = vmax.f32 %v1325, %v1326
    %v1328 = vsel %vm1213, %v882, -inf
    %v1329 = vmax.f32 %v1327, %v1328
    %v1330 = vsel %vm1213, %v887, -inf
    %v1331 = vmax.f32 %v1329, %v1330
    %v1332 = vsel %vm1213, %v890, -inf
    %v1333 = vmax.f32 %v1331, %v1332
    %v1334 = vrot.slane %v1333, 4
    %v1335 = vmax.f32 %v1333, %v1334
    %v1336 = vrot.slane %v1335, 2
    %v1337 = vmax.f32 %v1335, %v1336
    %v1338 = vrot.slane %v1337, 1
    %v1339 = vmax.f32 %v1337, %v1338
    %v1340 = vsel %vm1213, %v895, -inf
    %v1341 = vsel %vm1213, %v898, -inf
    %v1342 = vmax.f32 %v1340, %v1341
    %v1343 = vsel %vm1213, %v903, -inf
    %v1344 = vmax.f32 %v1342, %v1343
    %v1345 = vsel %vm1213, %v906, -inf
    %v1346 = vmax.f32 %v1344, %v1345
    %v1347 = vsel %vm1213, %v911, -inf
    %v1348 = vmax.f32 %v1346, %v1347
    %v1349 = vsel %vm1213, %v914, -inf
    %v1350 = vmax.f32 %v1348, %v1349
    %v1351 = vsel %vm1213, %v919, -inf
    %v1352 = vmax.f32 %v1350, %v1351
    %v1353 = vsel %vm1213, %v922, -inf
    %v1354 = vmax.f32 %v1352, %v1353
    %v1355 = vrot.slane %v1354, 4
    %v1356 = vmax.f32 %v1354, %v1355
    %v1357 = vrot.slane %v1356, 2
    %v1358 = vmax.f32 %v1356, %v1357
    %v1359 = vrot.slane %v1358, 1
    %v1360 = vmax.f32 %v1358, %v1359
    %v1361 = vsel %vm1213, %v927, -inf
    %v1362 = vsel %vm1213, %v930, -inf
    %v1363 = vmax.f32 %v1361, %v1362
    %v1364 = vsel %vm1213, %v935, -inf
    %v1365 = vmax.f32 %v1363, %v1364
    %v1366 = vsel %vm1213, %v938, -inf
    %v1367 = vmax.f32 %v1365, %v1366
    %v1368 = vsel %vm1213, %v943, -inf
    %v1369 = vmax.f32 %v1367, %v1368
    %v1370 = vsel %vm1213, %v946, -inf
    %v1371 = vmax.f32 %v1369, %v1370
    %v1372 = vsel %vm1213, %v951, -inf
    %v1373 = vmax.f32 %v1371, %v1372
    %v1374 = vsel %vm1213, %v954, -inf
    %v1375 = vmax.f32 %v1373, %v1374
    %v1376 = vrot.slane %v1375, 4
    %v1377 = vmax.f32 %v1375, %v1376
    %v1378 = vrot.slane %v1377, 2
    %v1379 = vmax.f32 %v1377, %v1378
    %v1380 = vrot.slane %v1379, 1
    %v1381 = vmax.f32 %v1379, %v1380
    %v1382 = vsel %vm1213, %v959, -inf
    %v1383 = vsel %vm1213, %v962, -inf
    %v1384 = vmax.f32 %v1382, %v1383
    %v1385 = vsel %vm1213, %v967, -inf
    %v1386 = vmax.f32 %v1384, %v1385
    %v1387 = vsel %vm1213, %v970, -inf
    %v1388 = vmax.f32 %v1386, %v1387
    %v1389 = vsel %vm1213, %v975, -inf
    %v1390 = vmax.f32 %v1388, %v1389
    %v1391 = vsel %vm1213, %v978, -inf
    %v1392 = vmax.f32 %v1390, %v1391
    %v1393 = vsel %vm1213, %v983, -inf
    %v1394 = vmax.f32 %v1392, %v1393
    %v1395 = vsel %vm1213, %v986, -inf
    %v1396 = vmax.f32 %v1394, %v1395
    %v1397 = vrot.slane %v1396, 4
    %v1398 = vmax.f32 %v1396, %v1397
    %v1399 = vrot.slane %v1398, 2
    %v1400 = vmax.f32 %v1398, %v1399
    %v1401 = vrot.slane %v1400, 1
    %v1402 = vmax.f32 %v1400, %v1401
    %v1403 = vsel %vm1213, %v991, -inf
    %v1404 = vsel %vm1213, %v994, -inf
    %v1405 = vmax.f32 %v1403, %v1404
    %v1406 = vsel %vm1213, %v999, -inf
    %v1407 = vmax.f32 %v1405, %v1406
    %v1408 = vsel %vm1213, %v1002, -inf
    %v1409 = vmax.f32 %v1407, %v1408
    %v1410 = vsel %vm1213, %v1007, -inf
    %v1411 = vmax.f32 %v1409, %v1410
    %v1412 = vsel %vm1213, %v1010, -inf
    %v1413 = vmax.f32 %v1411, %v1412
    %v1414 = vsel %vm1213, %v1015, -inf
    %v1415 = vmax.f32 %v1413, %v1414
    %v1416 = vsel %vm1213, %v1018, -inf
    %v1417 = vmax.f32 %v1415, %v1416
    %v1418 = vrot.slane %v1417, 4
    %v1419 = vmax.f32 %v1417, %v1418
    %v1420 = vrot.slane %v1419, 2
    %v1421 = vmax.f32 %v1419, %v1420
    %v1422 = vrot.slane %v1421, 1
    %v1423 = vmax.f32 %v1421, %v1422
    %v1424 = vsel %vm1213, %v1023, -inf
    %v1425 = vsel %vm1213, %v1026, -inf
    %v1426 = vmax.f32 %v1424, %v1425
    %v1427 = vsel %vm1213, %v1031, -inf
    %v1428 = vmax.f32 %v1426, %v1427
    %v1429 = vsel %vm1213, %v1034, -inf
    %v1430 = vmax.f32 %v1428, %v1429
    %v1431 = vsel %vm1213, %v1039, -inf
    %v1432 = vmax.f32 %v1430, %v1431
    %v1433 = vsel %vm1213, %v1042, -inf
    %v1434 = vmax.f32 %v1432, %v1433
    %v1435 = vsel %vm1213, %v1047, -inf
    %v1436 = vmax.f32 %v1434, %v1435
    %v1437 = vsel %vm1213, %v1050, -inf
    %v1438 = vmax.f32 %v1436, %v1437
    %v1439 = vrot.slane %v1438, 4
    %v1440 = vmax.f32 %v1438, %v1439
    %v1441 = vrot.slane %v1440, 2
    %v1442 = vmax.f32 %v1440, %v1441
    %v1443 = vrot.slane %v1442, 1
    %v1444 = vmax.f32 %v1442, %v1443
    %v1445 = vsel %vm1213, %v1055, -inf
    %v1446 = vsel %vm1213, %v1058, -inf
    %v1447 = vmax.f32 %v1445, %v1446
    %v1448 = vsel %vm1213, %v1063, -inf
    %v1449 = vmax.f32 %v1447, %v1448
    %v1450 = vsel %vm1213, %v1066, -inf
    %v1451 = vmax.f32 %v1449, %v1450
    %v1452 = vsel %vm1213, %v1071, -inf
    %v1453 = vmax.f32 %v1451, %v1452
    %v1454 = vsel %vm1213, %v1074, -inf
    %v1455 = vmax.f32 %v1453, %v1454
    %v1456 = vsel %vm1213, %v1079, -inf
    %v1457 = vmax.f32 %v1455, %v1456
    %v1458 = vsel %vm1213, %v1082, -inf
    %v1459 = vmax.f32 %v1457, %v1458
    %v1460 = vrot.slane %v1459, 4
    %v1461 = vmax.f32 %v1459, %v1460
    %v1462 = vrot.slane %v1461, 2
    %v1463 = vmax.f32 %v1461, %v1462
    %v1464 = vrot.slane %v1463, 1
    %v1465 = vmax.f32 %v1463, %v1464
    %v1466 = vsel %vm1213, %v1087, -inf
    %v1467 = vsel %vm1213, %v1090, -inf
    %v1468 = vmax.f32 %v1466, %v1467
    %v1469 = vsel %vm1213, %v1095, -inf
    %v1470 = vmax.f32 %v1468, %v1469
    %v1471 = vsel %vm1213, %v1098, -inf
    %v1472 = vmax.f32 %v1470, %v1471
    %v1473 = vsel %vm1213, %v1103, -inf
    %v1474 = vmax.f32 %v1472, %v1473
    %v1475 = vsel %vm1213, %v1106, -inf
    %v1476 = vmax.f32 %v1474, %v1475
    %v1477 = vsel %vm1213, %v1111, -inf
    %v1478 = vmax.f32 %v1476, %v1477
    %v1479 = vsel %vm1213, %v1114, -inf
    %v1480 = vmax.f32 %v1478, %v1479
    %v1481 = vrot.slane %v1480, 4
    %v1482 = vmax.f32 %v1480, %v1481
    %v1483 = vrot.slane %v1482, 2
    %v1484 = vmax.f32 %v1482, %v1483
    %v1485 = vrot.slane %v1484, 1
    %v1486 = vmax.f32 %v1484, %v1485
    %v1487 = vsel %vm1213, %v1119, -inf
    %v1488 = vsel %vm1213, %v1122, -inf
    %v1489 = vmax.f32 %v1487, %v1488
    %v1490 = vsel %vm1213, %v1127, -inf
    %v1491 = vmax.f32 %v1489, %v1490
    %v1492 = vsel %vm1213, %v1130, -inf
    %v1493 = vmax.f32 %v1491, %v1492
    %v1494 = vsel %vm1213, %v1135, -inf
    %v1495 = vmax.f32 %v1493, %v1494
    %v1496 = vsel %vm1213, %v1138, -inf
    %v1497 = vmax.f32 %v1495, %v1496
    %v1498 = vsel %vm1213, %v1143, -inf
    %v1499 = vmax.f32 %v1497, %v1498
    %v1500 = vsel %vm1213, %v1146, -inf
    %v1501 = vmax.f32 %v1499, %v1500
    %v1502 = vrot.slane %v1501, 4
    %v1503 = vmax.f32 %v1501, %v1502
    %v1504 = vrot.slane %v1503, 2
    %v1505 = vmax.f32 %v1503, %v1504
    %v1506 = vrot.slane %v1505, 1
    %v1507 = vmax.f32 %v1505, %v1506
    %v1508 = vsel %vm1213, %v1151, -inf
    %v1509 = vsel %vm1213, %v1154, -inf
    %v1510 = vmax.f32 %v1508, %v1509
    %v1511 = vsel %vm1213, %v1159, -inf
    %v1512 = vmax.f32 %v1510, %v1511
    %v1513 = vsel %vm1213, %v1162, -inf
    %v1514 = vmax.f32 %v1512, %v1513
    %v1515 = vsel %vm1213, %v1167, -inf
    %v1516 = vmax.f32 %v1514, %v1515
    %v1517 = vsel %vm1213, %v1170, -inf
    %v1518 = vmax.f32 %v1516, %v1517
    %v1519 = vsel %vm1213, %v1175, -inf
    %v1520 = vmax.f32 %v1518, %v1519
    %v1521 = vsel %vm1213, %v1178, -inf
    %v1522 = vmax.f32 %v1520, %v1521
    %v1523 = vrot.slane %v1522, 4
    %v1524 = vmax.f32 %v1522, %v1523
    %v1525 = vrot.slane %v1524, 2
    %v1526 = vmax.f32 %v1524, %v1525
    %v1527 = vrot.slane %v1526, 1
    %v1528 = vmax.f32 %v1526, %v1527
    %v1529 = vsel %vm1213, %v1183, -inf
    %v1530 = vsel %vm1213, %v1186, -inf
    %v1531 = vmax.f32 %v1529, %v1530
    %v1532 = vsel %vm1213, %v1191, -inf
    %v1533 = vmax.f32 %v1531, %v1532
    %v1534 = vsel %vm1213, %v1194, -inf
    %v1535 = vmax.f32 %v1533, %v1534
    %v1536 = vsel %vm1213, %v1199, -inf
    %v1537 = vmax.f32 %v1535, %v1536
    %v1538 = vsel %vm1213, %v1202, -inf
    %v1539 = vmax.f32 %v1537, %v1538
    %v1540 = vsel %vm1213, %v1207, -inf
    %v1541 = vmax.f32 %v1539, %v1540
    %v1542 = vsel %vm1213, %v1210, -inf
    %v1543 = vmax.f32 %v1541, %v1542
    %v1544 = vrot.slane %v1543, 4
    %v1545 = vmax.f32 %v1543, %v1544
    %v1546 = vrot.slane %v1545, 2
    %v1547 = vmax.f32 %v1545, %v1546
    %v1548 = vrot.slane %v1547, 1
    %v1549 = vmax.f32 %v1547, %v1548
    %p1550 = scmp.eq.s32.totalorder 0, 0
    // Predicated region
    $region10: #{tpu_custom_call.1} parent=1 // pred_check
      %p1551 = pneg %p1550
    $region11: #{tpu_custom_call.1} parent=1 // pred_check_branch
      %1553 = sbr.rel (%p1551) target = $region13
    $region12: #{tpu_custom_call.1} parent=1 // pred_region
      %vm1570 = vcmask 1041409
      %v1571 = vsel %vm1570, %v1255, %v1234
      %vm1572 = vcmask 1042434
      %v1573 = vsel %vm1572, %v1276, %v1571
      %vm1574 = vcmask 1043459
      %v1575 = vsel %vm1574, %v1297, %v1573
      %vm1576 = vcmask 1044484
      %v1577 = vsel %vm1576, %v1318, %v1575
      %vm1578 = vcmask 1045509
      %v1579 = vsel %vm1578, %v1339, %v1577
      %vm1580 = vcmask 1046534
      %v1581 = vsel %vm1580, %v1360, %v1579
      %vm1582 = vcmask 1047559
      %v1583 = vsel %vm1582, %v1381, %v1581
      %v1584 = vsel %vm1570, %v1423, %v1402
      %v1585 = vsel %vm1572, %v1444, %v1584
      %v1586 = vsel %vm1574, %v1465, %v1585
      %v1587 = vsel %vm1576, %v1486, %v1586
      %v1588 = vsel %vm1578, %v1507, %v1587
      %v1589 = vsel %vm1580, %v1528, %v1588
      %v1590 = vsel %vm1582, %v1549, %v1589
      %1593 = vst.msk [vmem:[#allocation2] sm:$0xff] %vm1213, %v1583
      %1594 = vst.msk [vmem:[#allocation2 + $0x8] sm:$0xff] %vm1213, %v1590
    $region13: #{tpu_custom_call.1} parent=1 // pred_fallthru
      _
    %p1595 = scmp.gt.s32.totalorder 0, 0
    // Predicated region
    $region14: #{tpu_custom_call.1} parent=1 // pred_check
      %p1596 = pneg %p1595
    $region15: #{tpu_custom_call.1} parent=1 // pred_check_branch
      %1598 = sbr.rel (%p1596) target = $region17
    $region16: #{tpu_custom_call.1} parent=1 // pred_region
      %v1599 = vld [vmem:[#allocation2] sm:$0xff]
      %v1600 = vld [vmem:[#allocation2 + $0x8] sm:$0xff]
      %vm1617 = vcmask 1041409
      %v1618 = vsel %vm1617, %v1255, %v1234
      %vm1619 = vcmask 1042434
      %v1620 = vsel %vm1619, %v1276, %v1618
      %vm1621 = vcmask 1043459
      %v1622 = vsel %vm1621, %v1297, %v1620
      %vm1623 = vcmask 1044484
      %v1624 = vsel %vm1623, %v1318, %v1622
      %vm1625 = vcmask 1045509
      %v1626 = vsel %vm1625, %v1339, %v1624
      %vm1627 = vcmask 1046534
      %v1628 = vsel %vm1627, %v1360, %v1626
      %vm1629 = vcmask 1047559
      %v1630 = vsel %vm1629, %v1381, %v1628
      %v1631 = vsel %vm1617, %v1423, %v1402
      %v1632 = vsel %vm1619, %v1444, %v1631
      %v1633 = vsel %vm1621, %v1465, %v1632
      %v1634 = vsel %vm1623, %v1486, %v1633
      %v1635 = vsel %vm1625, %v1507, %v1634
      %v1636 = vsel %vm1627, %v1528, %v1635
      %v1637 = vsel %vm1629, %v1549, %v1636
      %v1640 = vmax.f32 %v1599, %v1630
      %v1641 = vmax.f32 %v1600, %v1637
      %1642 = vst.msk [vmem:[#allocation2] sm:$0xff] %vm1213, %v1640
      %1643 = vst.msk [vmem:[#allocation2 + $0x8] sm:$0xff] %vm1213, %v1641
    $region17: #{tpu_custom_call.1} parent=1 // pred_fallthru
      _
    // Predicated region
    $region18: #{tpu_custom_call.1} parent=1 // pred_check
      _
    $region19: #{tpu_custom_call.1} parent=1 // pred_check_branch
      %1645 = sbr.rel (0) target = $region21
    $region20: #{tpu_custom_call.1} parent=1 // pred_region
      %s1647 = ssub.s32 256, 256
      %1648 = vsyncadd [#allocation3], %s1647
      %s1649 = sshll.u32 [#allocation2], 4
      %s1650 = int_to_ptr.vmem [resolvable:$true] %s1649
      %1655 = dma.vmem_to_hbm [thread:$0]  %s1650, 256, %s2, [#allocation3], 128, 128, 8
    $region21: #{tpu_custom_call.1} parent=1 // pred_fallthru
      _
    // Predicated region
    $region22: #{tpu_custom_call.1} parent=1 // pred_check
      _
    $region23: #{tpu_custom_call.1} parent=1 // pred_check_branch
      %1657 = sbr.rel (0) target = $region25
    $region24: #{tpu_custom_call.1} parent=1 // pred_region
      %1658 = dma.done [#allocation3], 256
    $region25: #{tpu_custom_call.1} parent=1 // pred_fallthru
      _
    %1659 = vsyncpa [#allocation3], 1

</llo_original>
